<compile_context>
chip_gen: v5e
topology: v5e:2x2
jax: 0.10.0
libtpu: 0.0.40
codegen_flags: <defaults>
</compile_context>

<pallas_src>
import functools
import math

import jax
import jax.numpy as jnp
from jax import lax
from jax.experimental import pallas as pl
from jax.experimental.pallas import tpu as pltpu


# Packed output slab layout, rows of the (17, N) output:
#   [0:3)   shs           (sigmoid, use_rgb=True)
#   [3:6)   scaling       (trunc_exp -> clamp to [0, clip_scaling])
#   [6:9)   xyz           (pts + restricted offset)
#   [9:10)  opacity       (sigmoid)
#   [10:14) rotation      (L2-normalized quaternion)
#   [14:17) offset        (the raw restricted offset, also returned by torch)
_D_HEADS = 14        # fused linear output width: 3 + 3 + 3 + 1 + 4
_D_HEADS_PAD = 16    # padded to an 8-sublane multiple
_D_OUT = 17

# Contract the last dim of both operands: (16, C) x (T, C) -> (16, T).
_NT_DIMS = (((1,), (1,)), ((), ()))


def _gs_layer_kernel(x_ref, ptsT_ref, wt_ref, b_ref, oT_ref, *,
                     clip_scaling, max_step):
    # x_ref: (T, C) features; wt_ref: (16, C) transposed fused head weights
    # (rows 14..15 zero); b_ref: (16, 1) f32 bias; ptsT_ref: (3, T) f32;
    # oT_ref: (17, T) lane-dense packed output.

    # One fused MXU matmul for all five heads, produced directly in the
    # lane-dense (heads, rows) orientation -> no in-kernel transpose needed.
    h = lax.dot_general(wt_ref[...], x_ref[...], _NT_DIMS,
                        preferred_element_type=jnp.float32)      # (16, T) f32
    h = h + b_ref[...]

    # Single EUP sigmoid pass over the packed block (covers shs, xyz-offset,
    # opacity rows; the extra rows are free since they share the same vregs).
    sig = jax.nn.sigmoid(h)

    shs = sig[0:3, :]                                   # use_rgb=True

    scaling = jnp.exp(h[3:6, :])                        # trunc_exp forward
    if clip_scaling is not None:
        scaling = jnp.clip(scaling, 0.0, clip_scaling)

    off = (sig[6:9, :] - 0.5) * max_step                # restrict_offset=True
    xyz = ptsT_ref[...].astype(jnp.float32) + off       # xyz_offset=True

    opacity = sig[9:10, :]

    # rotation: torch.nn.functional.normalize (L2 over the head axis, eps=1e-12)
    rot = h[10:14, :]
    nrm = jnp.sqrt(rot[0:1] * rot[0:1] + rot[1:2] * rot[1:2]
                   + rot[2:3] * rot[2:3] + rot[3:4] * rot[3:4])
    rot = rot / jnp.maximum(nrm, 1e-12)

    out = jnp.concatenate([shs, scaling, xyz, opacity, rot, off], axis=0)
    oT_ref[...] = out.astype(oT_ref.dtype)


def _vmem_budget_bytes():
    cap = None
    try:
        cap = int(pltpu.get_tpu_info().vmem_capacity_bytes)
    except Exception:
        cap = None
    if not cap:
        cap = 64 << 20  # assume the smallest generation (v7x: 64 MiB / TC)
    # Keep the accounted working set well under the 32 MiB scoped limit we
    # request and under ~1/3 of physical VMEM (headroom for compiler temps).
    return min(22 << 20, cap // 3)


def _pick_tile_rows(n, c, in_bytes, out_bytes, max_tile_rows):
    """Largest row tile (multiple of 512) that fits the per-chip VMEM budget."""
    per_row = (2 * c * in_bytes        # x tile, double buffered
               + 2 * 8 * 4             # pts^T tile (3 rows padded to 8 sublanes)
               + 2 * 24 * out_bytes    # out tile (17 rows padded to 24 sublanes)
               + 4 * _D_HEADS_PAD * 4)  # (16, T) f32 temporaries (h, sig, ...)
    fixed = 4 * _D_HEADS_PAD * c * in_bytes + (2 << 20)  # weights + slack
    budget = max(_vmem_budget_bytes() - fixed, 1 << 20)
    t = int(budget // per_row)
    t = min(t, int(max_tile_rows))
    t = (t // 512) * 512
    t = max(t, 512)
    # Single grid step if everything fits in one tile (grid steps cost
    # ~0.35 us each and the kernel is HBM-bound, not compute-bound).
    n_single = ((n + 511) // 512) * 512
    if n_single <= t:
        t = n_single
    return t


def gs_layer_pallas_slab(x, pts, w_fused, b_fused, *,
                         clip_scaling=0.2, xyz_offset_max_step=1.2 / 32,
                         max_tile_rows=8192, out_dtype=jnp.float32):
    """Fused GSLayer forward. Returns the packed lane-dense slab (17, N).

    x: (N, C) features (f32 or bf16 -- bf16 recommended, it halves HBM reads).
    pts: (N, 3) base points (kept f32 for xyz precision).
    w_fused: (C, 14) = concat of [W_shs | W_scaling | W_xyz | W_opacity | W_rot].
    b_fused: (14,) matching bias concat.
    """
    assert x.ndim == 2, "GSLayer.forward asserts len(x.shape) == 2"
    N, C = x.shape
    assert pts.shape == (N, 3)
    assert w_fused.shape == (C, _D_HEADS)
    assert b_fused.shape == (_D_HEADS,)

    in_dtype = x.dtype
    in_bytes = jnp.dtype(in_dtype).itemsize
    out_bytes = jnp.dtype(out_dtype).itemsize

    tile_n = _pick_tile_rows(N, C, in_bytes, out_bytes, max_tile_rows)
    n_pad = ((N + tile_n - 1) // tile_n) * tile_n

    if n_pad != N:
        x = jnp.pad(x, ((0, n_pad - N), (0, 0)))
        pts = jnp.pad(pts, ((0, n_pad - N), (0, 0)))

    # Transposed fused head weights, zero-padded to 16 rows (8-sublane
    # aligned). Tiny; constant index map keeps them VMEM-resident.
    wt = jnp.pad(jnp.transpose(w_fused),
                 ((0, _D_HEADS_PAD - _D_HEADS), (0, 0))).astype(in_dtype)
    b = jnp.pad(b_fused.astype(jnp.float32),
                (0, _D_HEADS_PAD - _D_HEADS)).reshape(_D_HEADS_PAD, 1)
    pts_t = jnp.transpose(pts).astype(jnp.float32)       # (3, n_pad), tiny

    grid = (n_pad // tile_n,)

    slab_t = pl.pallas_call(
        functools.partial(_gs_layer_kernel,
                          clip_scaling=clip_scaling,
                          max_step=xyz_offset_max_step),
        out_shape=jax.ShapeDtypeStruct((_D_OUT, n_pad), out_dtype),
        grid_spec=pltpu.PrefetchScalarGridSpec(
            num_scalar_prefetch=0,
            grid=grid,
            in_specs=[
                # feature tile, streamed along the point axis
                pl.BlockSpec((tile_n, C), lambda i: (i, 0)),
                # transposed base points tile (lane-dense)
                pl.BlockSpec((3, tile_n), lambda i: (0, i)),
                # fused transposed weights / bias: constant -> VMEM resident
                pl.BlockSpec((_D_HEADS_PAD, C), lambda i: (0, 0)),
                pl.BlockSpec((_D_HEADS_PAD, 1), lambda i: (0, 0)),
            ],
            out_specs=pl.BlockSpec((_D_OUT, tile_n), lambda i: (0, i)),
        ),
        compiler_params=pltpu.CompilerParams(
            dimension_semantics=("parallel",),
            vmem_limit_bytes=32 * 1024 * 1024,
        ),
    )(x, pts_t, wt, b)

    return slab_t[:, :N]


def gs_layer_pallas(x, pts, w_fused, b_fused, **kwargs):
    """Convenience wrapper returning the torch-style attribute dict.

    Consumers that can take the packed (17, N) slab should call
    gs_layer_pallas_slab directly and avoid this re-slicing pass.
    """
    N = x.shape[0]
    slab_t = gs_layer_pallas_slab(x, pts, w_fused, b_fused, **kwargs)
    slab = jnp.transpose(slab_t)                          # (N, 17)
    return {
        "shs": slab[:, 0:3].reshape(N, -1, 3),
        "scaling": slab[:, 3:6],
        "xyz": slab[:, 6:9],
        "opacity": slab[:, 9:10],
        "rotation": slab[:, 10:14],
        "offset": slab[:, 14:17],
    }


def gs_layer_reference(x, pts, Ws, bs, *, clip_scaling, max_step):
    """Pure-JAX mirror of the PyTorch forward (per-head Linear layers)."""
    dot = functools.partial(jnp.dot, precision=jax.lax.Precision.HIGHEST)
    out = {}
    shs = jax.nn.sigmoid(dot(x, Ws["shs"]) + bs["shs"])
    out["shs"] = shs.reshape(x.shape[0], -1, 3)

    sc = jnp.exp(dot(x, Ws["scaling"]) + bs["scaling"])
    if clip_scaling is not None:
        sc = jnp.clip(sc, 0.0, clip_scaling)
    out["scaling"] = sc

    off = (jax.nn.sigmoid(dot(x, Ws["xyz"]) + bs["xyz"]) - 0.5) * max_step
    out["offset"] = off
    out["xyz"] = pts + off

    out["opacity"] = jax.nn.sigmoid(dot(x, Ws["opacity"]) + bs["opacity"])

    r = dot(x, Ws["rotation"]) + bs["rotation"]
    n = jnp.sqrt(jnp.sum(r * r, axis=-1, keepdims=True))
    out["rotation"] = r / jnp.maximum(n, 1e-12)
    return out


def _check(out, ref, tol, tag):
    for name in ref:
        assert out[name].shape == ref[name].shape, (
            f"[{tag}] {name}: shape {out[name].shape} vs {ref[name].shape}")
        err = float(jnp.max(jnp.abs(out[name].astype(jnp.float32)
                                    - ref[name].astype(jnp.float32))))
        assert err < tol, f"[{tag}] {name}: max|diff|={err} (tol={tol})"


if __name__ == "__main__":
    # Small demo shapes consistent with GSLayer.forward: x (N, C), pts (N, 3).
    C = 128            # in_channels
    N = 2000           # number of points
    clip_scaling = 0.2
    init_scaling = -5.0
    init_density = 0.1
    max_step = 1.2 / 32

    key = jax.random.PRNGKey(0)
    k = jax.random.split(key, 9)

    # Per-head parameters (forward semantics are parameter-agnostic; small
    # random weights make the check non-trivial while keeping the module's
    # characteristic bias values).
    Ws = {
        "shs":      0.05 * jax.random.normal(k[0], (C, 3), jnp.float32),
        "scaling":  0.02 * jax.random.normal(k[1], (C, 3), jnp.float32),
        "xyz":      0.02 * jax.random.normal(k[2], (C, 3), jnp.float32),
        "opacity":  0.02 * jax.random.normal(k[3], (C, 1), jnp.float32),
        "rotation": 0.02 * jax.random.normal(k[4], (C, 4), jnp.float32),
    }
    bs = {
        "shs":      0.05 * jax.random.normal(k[5], (3,), jnp.float32),
        "scaling":  jnp.full((3,), init_scaling, jnp.float32),
        "xyz":      jnp.zeros((3,), jnp.float32),
        "opacity":  jnp.full((1,), math.log(init_density / (1.0 - init_density)),
                             jnp.float32),
        "rotation": jnp.array([1.0, 0.0, 0.0, 0.0], jnp.float32),
    }

    order = ["shs", "scaling", "xyz", "opacity", "rotation"]
    w_fused = jnp.concatenate([Ws[n_] for n_ in order], axis=1)   # (C, 14)
    b_fused = jnp.concatenate([bs[n_] for n_ in order], axis=0)   # (14,)

    x = jax.random.normal(k[6], (N, C), jnp.float32)
    pts = 0.5 * jax.random.normal(k[7], (N, 3), jnp.float32)

    # --- Test 1: f32 feed, single-tile grid (default tile selection). ---
    out = gs_layer_pallas(x, pts, w_fused, b_fused,
                          clip_scaling=clip_scaling,
                          xyz_offset_max_step=max_step)
    out = jax.block_until_ready(out)
    ref = gs_layer_reference(x, pts, Ws, bs,
                             clip_scaling=clip_scaling, max_step=max_step)
    ref = jax.block_until_ready(ref)
    _check(out, ref, 3e-3, "f32")

    # --- Test 2: bf16 feed (halves HBM reads), multi-step grid + padding. ---
    x_b = x.astype(jnp.bfloat16)
    w_b = w_fused.astype(jnp.bfloat16)
    out_b = gs_layer_pallas(x_b, pts, w_b, b_fused,
                            clip_scaling=clip_scaling,
                            xyz_offset_max_step=max_step,
                            max_tile_rows=512)
    out_b = jax.block_until_ready(out_b)
    Ws_b = {n_: Ws[n_].astype(jnp.bfloat16).astype(jnp.float32) for n_ in Ws}
    ref_b = gs_layer_reference(x_b.astype(jnp.float32), pts, Ws_b, bs,
                               clip_scaling=clip_scaling, max_step=max_step)
    ref_b = jax.block_until_ready(ref_b)
    _check(out_b, ref_b, 3e-3, "bf16")

    print("KERNEL_OK")
</pallas_src>

<mosaic_0001>
module attributes {stable_mosaic.version = 11 : i64} {
  func.func @_gs_layer_kernel(%arg0: i32, %arg1: memref<2048x128xf32, #tpu.memory_space<vmem>>, %arg2: memref<3x2048xf32, #tpu.memory_space<vmem>>, %arg3: memref<16x128xf32, #tpu.memory_space<vmem>>, %arg4: memref<16x1xf32, #tpu.memory_space<vmem>>, %arg5: memref<17x2048xf32, #tpu.memory_space<vmem>>) attributes {dimension_semantics = [#tpu.dimension_semantics<parallel>], iteration_bounds = array<i64: 1>, scalar_prefetch = 0 : i64, scratch_operands = 0 : i64, tpu.core_type = #tpu.core_type<tc>, window_params = [{transform_indices = @transform_0, window_bounds = array<i64: 2048, 128>}, {transform_indices = @transform_1, window_bounds = array<i64: 3, 2048>}, {pipeline_mode = #tpu.pipeline_mode<synchronous>, transform_indices = @transform_2, window_bounds = array<i64: 16, 128>}, {pipeline_mode = #tpu.pipeline_mode<synchronous>, transform_indices = @transform_3, window_bounds = array<i64: 16, 1>}, {transform_indices = @transform_4, window_bounds = array<i64: 17, 2048>}]} {
    %c0 = arith.constant 0 : index
    %c0_0 = arith.constant 0 : index
    %0 = vector.load %arg3[%c0, %c0_0] : memref<16x128xf32, #tpu.memory_space<vmem>>, vector<16x128xf32>
    %c0_1 = arith.constant 0 : index
    %c0_2 = arith.constant 0 : index
    %1 = vector.load %arg1[%c0_1, %c0_2] : memref<2048x128xf32, #tpu.memory_space<vmem>>, vector<2048x128xf32>
    %cst = arith.constant dense<0.000000e+00> : vector<16x2048xf32>
    %2 = tpu.matmul %0, %1, %cst {dimension_numbers = #tpu.dot_dimension_numbers<[1], [1], [0], [0], [0, 0, 1, 0], [], []>} : vector<16x128xf32>, vector<2048x128xf32>, vector<16x2048xf32> -> vector<16x2048xf32>
    %c0_3 = arith.constant 0 : index
    %c0_4 = arith.constant 0 : index
    %3 = vector.load %arg4[%c0_3, %c0_4] : memref<16x1xf32, #tpu.memory_space<vmem>>, vector<16x1xf32>
    %4 = vector.broadcast %3 : vector<16x1xf32> to vector<16x2048xf32>
    %5 = arith.addf %2, %4 : vector<16x2048xf32>
    %6 = arith.negf %5 : vector<16x2048xf32>
    %7 = math.exp %6 : vector<16x2048xf32>
    %cst_5 = arith.constant 1.000000e+00 : f32
    %8 = vector.broadcast %cst_5 : f32 to vector<16x2048xf32>
    %9 = arith.addf %8, %7 : vector<16x2048xf32>
    %10 = arith.divf %8, %9 : vector<16x2048xf32>
    %11 = vector.extract_strided_slice %10 {offsets = [0, 0], sizes = [3, 2048], strides = [1, 1]} : vector<16x2048xf32> to vector<3x2048xf32>
    %12 = vector.extract_strided_slice %5 {offsets = [3, 0], sizes = [3, 2048], strides = [1, 1]} : vector<16x2048xf32> to vector<3x2048xf32>
    %13 = math.exp %12 : vector<3x2048xf32>
    %cst_6 = arith.constant 0.000000e+00 : f32
    %cst_7 = arith.constant 2.000000e-01 : f32
    %14 = vector.broadcast %cst_6 : f32 to vector<3x2048xf32>
    %15 = arith.maximumf %14, %13 : vector<3x2048xf32>
    %16 = vector.broadcast %cst_7 : f32 to vector<3x2048xf32>
    %17 = arith.minimumf %16, %15 : vector<3x2048xf32>
    %18 = vector.extract_strided_slice %10 {offsets = [6, 0], sizes = [3, 2048], strides = [1, 1]} : vector<16x2048xf32> to vector<3x2048xf32>
    %cst_8 = arith.constant 5.000000e-01 : f32
    %19 = vector.broadcast %cst_8 : f32 to vector<3x2048xf32>
    %20 = arith.subf %18, %19 : vector<3x2048xf32>
    %cst_9 = arith.constant 3.750000e-02 : f32
    %21 = vector.broadcast %cst_9 : f32 to vector<3x2048xf32>
    %22 = arith.mulf %20, %21 : vector<3x2048xf32>
    %c0_10 = arith.constant 0 : index
    %c0_11 = arith.constant 0 : index
    %23 = vector.load %arg2[%c0_10, %c0_11] : memref<3x2048xf32, #tpu.memory_space<vmem>>, vector<3x2048xf32>
    %24 = arith.addf %23, %22 : vector<3x2048xf32>
    %25 = vector.extract_strided_slice %10 {offsets = [9, 0], sizes = [1, 2048], strides = [1, 1]} : vector<16x2048xf32> to vector<1x2048xf32>
    %26 = vector.extract_strided_slice %5 {offsets = [10, 0], sizes = [4, 2048], strides = [1, 1]} : vector<16x2048xf32> to vector<4x2048xf32>
    %27 = vector.extract_strided_slice %26 {offsets = [0, 0], sizes = [1, 2048], strides = [1, 1]} : vector<4x2048xf32> to vector<1x2048xf32>
    %28 = vector.extract_strided_slice %26 {offsets = [0, 0], sizes = [1, 2048], strides = [1, 1]} : vector<4x2048xf32> to vector<1x2048xf32>
    %29 = arith.mulf %27, %28 : vector<1x2048xf32>
    %30 = vector.extract_strided_slice %26 {offsets = [1, 0], sizes = [1, 2048], strides = [1, 1]} : vector<4x2048xf32> to vector<1x2048xf32>
    %31 = vector.extract_strided_slice %26 {offsets = [1, 0], sizes = [1, 2048], strides = [1, 1]} : vector<4x2048xf32> to vector<1x2048xf32>
    %32 = arith.mulf %30, %31 : vector<1x2048xf32>
    %33 = arith.addf %29, %32 : vector<1x2048xf32>
    %34 = vector.extract_strided_slice %26 {offsets = [2, 0], sizes = [1, 2048], strides = [1, 1]} : vector<4x2048xf32> to vector<1x2048xf32>
    %35 = vector.extract_strided_slice %26 {offsets = [2, 0], sizes = [1, 2048], strides = [1, 1]} : vector<4x2048xf32> to vector<1x2048xf32>
    %36 = arith.mulf %34, %35 : vector<1x2048xf32>
    %37 = arith.addf %33, %36 : vector<1x2048xf32>
    %38 = vector.extract_strided_slice %26 {offsets = [3, 0], sizes = [1, 2048], strides = [1, 1]} : vector<4x2048xf32> to vector<1x2048xf32>
    %39 = vector.extract_strided_slice %26 {offsets = [3, 0], sizes = [1, 2048], strides = [1, 1]} : vector<4x2048xf32> to vector<1x2048xf32>
    %40 = arith.mulf %38, %39 : vector<1x2048xf32>
    %41 = arith.addf %37, %40 : vector<1x2048xf32>
    %42 = math.sqrt %41 : vector<1x2048xf32>
    %cst_12 = arith.constant 9.99999996E-13 : f32
    %43 = vector.broadcast %cst_12 : f32 to vector<1x2048xf32>
    %44 = arith.maximumf %42, %43 : vector<1x2048xf32>
    %45 = vector.broadcast %44 : vector<1x2048xf32> to vector<4x2048xf32>
    %46 = arith.divf %26, %45 : vector<4x2048xf32>
    %47 = tpu.concatenate %11, %17, %24, %25, %46, %22 in 0 : vector<3x2048xf32>, vector<3x2048xf32>, vector<3x2048xf32>, vector<1x2048xf32>, vector<4x2048xf32>, vector<3x2048xf32> -> vector<17x2048xf32>
    %c0_13 = arith.constant 0 : index
    %c0_14 = arith.constant 0 : index
    %48 = vector.load %arg5[%c0_13, %c0_14] : memref<17x2048xf32, #tpu.memory_space<vmem>>, vector<17x2048xf32>
    tpu.vector_store %arg5[%c0_13, %c0_14], %47 {strides = array<i32>} : memref<17x2048xf32, #tpu.memory_space<vmem>>, vector<17x2048xf32>,
    return
  }
  func.func @transform_0(%arg0: i32) -> (i32, i32) {
    %c0_i32 = arith.constant 0 : i32
    %c0_i32_0 = arith.constant 0 : i32
    return %arg0, %c0_i32 : i32, i32
  }
  func.func @transform_1(%arg0: i32) -> (i32, i32) {
    %c0_i32 = arith.constant 0 : i32
    %c0_i32_0 = arith.constant 0 : i32
    return %c0_i32, %arg0 : i32, i32
  }
  func.func @transform_2(%arg0: i32) -> (i32, i32) {
    %c0_i32 = arith.constant 0 : i32
    %c0_i32_0 = arith.constant 0 : i32
    %c0_i32_1 = arith.constant 0 : i32
    return %c0_i32, %c0_i32_0 : i32, i32
  }
  func.func @transform_3(%arg0: i32) -> (i32, i32) {
    %c0_i32 = arith.constant 0 : i32
    %c0_i32_0 = arith.constant 0 : i32
    %c0_i32_1 = arith.constant 0 : i32
    return %c0_i32, %c0_i32_0 : i32, i32
  }
  func.func @transform_4(%arg0: i32) -> (i32, i32) {
    %c0_i32 = arith.constant 0 : i32
    %c0_i32_0 = arith.constant 0 : i32
    return %c0_i32, %arg0 : i32, i32
  }
}

</mosaic_0001>

<llo_original>
// kernel: tpu_custom_call.1
$region0: #{tpu_custom_call.1}
  #allocation0 [shape = 'u32[]', space=smem, size = 0x4, offset = 0x4, fixed_abs, tag = 'smem constant byte address 0x4 - core index']
  #allocation1 [shape = 'u32[72,128]{1,0:T(1,128)}', space=vmem, size = 0x9000, scoped, tag = 'internal scratch']
  %s0 = inlined_call_operand.hbm [shape: f32[2048,128], index: 0, kind: input, shape index: {}]
  %s1 = inlined_call_operand.hbm [shape: f32[3,2048], index: 1, kind: input, shape index: {}]
  %s2 = inlined_call_operand.vmem [shape: f32[16,128], index: 2, kind: input, shape index: {}]
  %s3 = inlined_call_operand.vmem [shape: f32[16,1], index: 3, kind: input, shape index: {}]
  %s4 = inlined_call_operand.hbm [shape: f32[17,2048], index: 4, kind: output, shape index: {}]
  %s5 = sld [smem:[#allocation0]]
  $region34: #{tpu_custom_call.1} parent=0
    _
  %s7 = ssub.s32 1, %s5
  %s8 = scalar_select 0, %s7, %s5
  $region1: #{tpu_custom_call.1} parent=0
    #allocation2 [shape = 'u8[1048576]{0}', space=vmem, size = 0x100000, scoped, tag = 'input window, operand 0, single buffered']
    #allocation3 [shape = 's32[1]{0}', space=sflag, size = 0x4, scoped, tag = 'scoped memory for tpu_custom_call.1']
    #allocation4 [shape = 's32[1]{0}', space=sflag, size = 0x4, scoped, tag = 'scoped memory for tpu_custom_call.1']
    #allocation5 [shape = 'u8[32768]{0}', space=vmem, size = 0x8000, scoped, tag = 'input window, operand 1, single buffered']
    #allocation6 [shape = 's32[1]{0}', space=sflag, size = 0x4, scoped, tag = 'scoped memory for tpu_custom_call.1']
    #allocation7 [shape = 'u8[196608]{0}', space=vmem, size = 0x30000, scoped, tag = 'output window, operand 0, single buffered']
    %9 = vsyncpa [#allocation3], 0
    %10 = vsyncpa [#allocation6], 0
    %11 = vsyncpa [#allocation4], 0
    // Predicated region
    $region2: #{tpu_custom_call.1} parent=1 // pred_check
      _
    $region3: #{tpu_custom_call.1} parent=1 // pred_check_branch
      %13 = sbr.rel (0) target = $region5
    $region4: #{tpu_custom_call.1} parent=1 // pred_region
      %15 = vsyncadd [#allocation3], 0
      %s16 = sshll.u32 %s0, 4
      %s17 = int_to_ptr.hbm [resolvable:$true] %s16
      %s18 = sshll.u32 [#allocation2], 4
      %s19 = int_to_ptr.vmem [resolvable:$true] %s18
      %24 = dma.hbm_to_vmem [thread:$0]  %s17, 32768, %s19, [#allocation3], 128, 128, 8
    $region5: #{tpu_custom_call.1} parent=1 // pred_fallthru
      _
    // Predicated region
    $region6: #{tpu_custom_call.1} parent=1 // pred_check
      _
    $region7: #{tpu_custom_call.1} parent=1 // pred_check_branch
      %26 = sbr.rel (0) target = $region9
    $region8: #{tpu_custom_call.1} parent=1 // pred_region
      %28 = vsyncadd [#allocation6], 0
      %s30 = sshll.u32 %s1, 4
      %s31 = int_to_ptr.hbm [resolvable:$true] %s30
      %s32 = sshll.u32 [#allocation5], 4
      %s33 = int_to_ptr.vmem [resolvable:$true] %s32
      %35 = dma.hbm_to_vmem [thread:$0]  %s31, 1024, %s33, [#allocation6]
    $region9: #{tpu_custom_call.1} parent=1 // pred_fallthru
      _
    // Predicated region
    $region10: #{tpu_custom_call.1} parent=1 // pred_check
      _
    $region11: #{tpu_custom_call.1} parent=1 // pred_check_branch
      %37 = sbr.rel (0) target = $region13
    $region12: #{tpu_custom_call.1} parent=1 // pred_region
      _
    $region13: #{tpu_custom_call.1} parent=1 // pred_fallthru
      _
    // Predicated region
    $region14: #{tpu_custom_call.1} parent=1 // pred_check
      _
    $region15: #{tpu_custom_call.1} parent=1 // pred_check_branch
      %39 = sbr.rel (0) target = $region17
    $region16: #{tpu_custom_call.1} parent=1 // pred_region
      _
    $region17: #{tpu_custom_call.1} parent=1 // pred_fallthru
      _
    // Predicated region
    $region18: #{tpu_custom_call.1} parent=1 // pred_check
      _
    $region19: #{tpu_custom_call.1} parent=1 // pred_check_branch
      %41 = sbr.rel (0) target = $region21
    $region20: #{tpu_custom_call.1} parent=1 // pred_region
      %43 = dma.done [#allocation3], 32768
    $region21: #{tpu_custom_call.1} parent=1 // pred_fallthru
      _
    // Predicated region
    $region22: #{tpu_custom_call.1} parent=1 // pred_check
      _
    $region23: #{tpu_custom_call.1} parent=1 // pred_check_branch
      %45 = sbr.rel (0) target = $region25
    $region24: #{tpu_custom_call.1} parent=1 // pred_region
      %47 = dma.done [#allocation6], 1024
    $region25: #{tpu_custom_call.1} parent=1 // pred_fallthru
      _
    %v48 = vld [vmem:[%s2] sm:$0xff]
    %v49 = vld [vmem:[%s2 + $0x8] sm:$0xff]
    %v50 = vld [vmem:[#allocation2] sm:$0xff]
    %v51 = vld [vmem:[#allocation2 + $0x8] sm:$0xff]
    %v52 = vld [vmem:[#allocation2 + $0x10] sm:$0xff]
    %v53 = vld [vmem:[#allocation2 + $0x18] sm:$0xff]
    %v54 = vld [vmem:[#allocation2 + $0x20] sm:$0xff]
    %v55 = vld [vmem:[#allocation2 + $0x28] sm:$0xff]
    %v56 = vld [vmem:[#allocation2 + $0x30] sm:$0xff]
    %v57 = vld [vmem:[#allocation2 + $0x38] sm:$0xff]
    %v58 = vld [vmem:[#allocation2 + $0x40] sm:$0xff]
    %v59 = vld [vmem:[#allocation2 + $0x48] sm:$0xff]
    %v60 = vld [vmem:[#allocation2 + $0x50] sm:$0xff]
    %v61 = vld [vmem:[#allocation2 + $0x58] sm:$0xff]
    %v62 = vld [vmem:[#allocation2 + $0x60] sm:$0xff]
    %v63 = vld [vmem:[#allocation2 + $0x68] sm:$0xff]
    %v64 = vld [vmem:[#allocation2 + $0x70] sm:$0xff]
    %v65 = vld [vmem:[#allocation2 + $0x78] sm:$0xff]
    %v66 = vld [vmem:[#allocation2 + $0x80] sm:$0xff]
    %v67 = vld [vmem:[#allocation2 + $0x88] sm:$0xff]
    %v68 = vld [vmem:[#allocation2 + $0x90] sm:$0xff]
    %v69 = vld [vmem:[#allocation2 + $0x98] sm:$0xff]
    %v70 = vld [vmem:[#allocation2 + $0xa0] sm:$0xff]
    %v71 = vld [vmem:[#allocation2 + $0xa8] sm:$0xff]
    %v72 = vld [vmem:[#allocation2 + $0xb0] sm:$0xff]
    %v73 = vld [vmem:[#allocation2 + $0xb8] sm:$0xff]
    %v74 = vld [vmem:[#allocation2 + $0xc0] sm:$0xff]
    %v75 = vld [vmem:[#allocation2 + $0xc8] sm:$0xff]
    %v76 = vld [vmem:[#allocation2 + $0xd0] sm:$0xff]
    %v77 = vld [vmem:[#allocation2 + $0xd8] sm:$0xff]
    %v78 = vld [vmem:[#allocation2 + $0xe0] sm:$0xff]
    %v79 = vld [vmem:[#allocation2 + $0xe8] sm:$0xff]
    %v80 = vld [vmem:[#allocation2 + $0xf0] sm:$0xff]
    %v81 = vld [vmem:[#allocation2 + $0xf8] sm:$0xff]
    %v82 = vld [vmem:[#allocation2 + $0x100] sm:$0xff]
    %v83 = vld [vmem:[#allocation2 + $0x108] sm:$0xff]
    %v84 = vld [vmem:[#allocation2 + $0x110] sm:$0xff]
    %v85 = vld [vmem:[#allocation2 + $0x118] sm:$0xff]
    %v86 = vld [vmem:[#allocation2 + $0x120] sm:$0xff]
    %v87 = vld [vmem:[#allocation2 + $0x128] sm:$0xff]
    %v88 = vld [vmem:[#allocation2 + $0x130] sm:$0xff]
    %v89 = vld [vmem:[#allocation2 + $0x138] sm:$0xff]
    %v90 = vld [vmem:[#allocation2 + $0x140] sm:$0xff]
    %v91 = vld [vmem:[#allocation2 + $0x148] sm:$0xff]
    %v92 = vld [vmem:[#allocation2 + $0x150] sm:$0xff]
    %v93 = vld [vmem:[#allocation2 + $0x158] sm:$0xff]
    %v94 = vld [vmem:[#allocation2 + $0x160] sm:$0xff]
    %v95 = vld [vmem:[#allocation2 + $0x168] sm:$0xff]
    %v96 = vld [vmem:[#allocation2 + $0x170] sm:$0xff]
    %v97 = vld [vmem:[#allocation2 + $0x178] sm:$0xff]
    %v98 = vld [vmem:[#allocation2 + $0x180] sm:$0xff]
    %v99 = vld [vmem:[#allocation2 + $0x188] sm:$0xff]
    %v100 = vld [vmem:[#allocation2 + $0x190] sm:$0xff]
    %v101 = vld [vmem:[#allocation2 + $0x198] sm:$0xff]
    %v102 = vld [vmem:[#allocation2 + $0x1a0] sm:$0xff]
    %v103 = vld [vmem:[#allocation2 + $0x1a8] sm:$0xff]
    %v104 = vld [vmem:[#allocation2 + $0x1b0] sm:$0xff]
    %v105 = vld [vmem:[#allocation2 + $0x1b8] sm:$0xff]
    %v106 = vld [vmem:[#allocation2 + $0x1c0] sm:$0xff]
    %v107 = vld [vmem:[#allocation2 + $0x1c8] sm:$0xff]
    %v108 = vld [vmem:[#allocation2 + $0x1d0] sm:$0xff]
    %v109 = vld [vmem:[#allocation2 + $0x1d8] sm:$0xff]
    %v110 = vld [vmem:[#allocation2 + $0x1e0] sm:$0xff]
    %v111 = vld [vmem:[#allocation2 + $0x1e8] sm:$0xff]
    %v112 = vld [vmem:[#allocation2 + $0x1f0] sm:$0xff]
    %v113 = vld [vmem:[#allocation2 + $0x1f8] sm:$0xff]
    %v114 = vld [vmem:[#allocation2 + $0x200] sm:$0xff]
    %v115 = vld [vmem:[#allocation2 + $0x208] sm:$0xff]
    %v116 = vld [vmem:[#allocation2 + $0x210] sm:$0xff]
    %v117 = vld [vmem:[#allocation2 + $0x218] sm:$0xff]
    %v118 = vld [vmem:[#allocation2 + $0x220] sm:$0xff]
    %v119 = vld [vmem:[#allocation2 + $0x228] sm:$0xff]
    %v120 = vld [vmem:[#allocation2 + $0x230] sm:$0xff]
    %v121 = vld [vmem:[#allocation2 + $0x238] sm:$0xff]
    %v122 = vld [vmem:[#allocation2 + $0x240] sm:$0xff]
    %v123 = vld [vmem:[#allocation2 + $0x248] sm:$0xff]
    %v124 = vld [vmem:[#allocation2 + $0x250] sm:$0xff]
    %v125 = vld [vmem:[#allocation2 + $0x258] sm:$0xff]
    %v126 = vld [vmem:[#allocation2 + $0x260] sm:$0xff]
    %v127 = vld [vmem:[#allocation2 + $0x268] sm:$0xff]
    %v128 = vld [vmem:[#allocation2 + $0x270] sm:$0xff]
    %v129 = vld [vmem:[#allocation2 + $0x278] sm:$0xff]
    %v130 = vld [vmem:[#allocation2 + $0x280] sm:$0xff]
    %v131 = vld [vmem:[#allocation2 + $0x288] sm:$0xff]
    %v132 = vld [vmem:[#allocation2 + $0x290] sm:$0xff]
    %v133 = vld [vmem:[#allocation2 + $0x298] sm:$0xff]
    %v134 = vld [vmem:[#allocation2 + $0x2a0] sm:$0xff]
    %v135 = vld [vmem:[#allocation2 + $0x2a8] sm:$0xff]
    %v136 = vld [vmem:[#allocation2 + $0x2b0] sm:$0xff]
    %v137 = vld [vmem:[#allocation2 + $0x2b8] sm:$0xff]
    %v138 = vld [vmem:[#allocation2 + $0x2c0] sm:$0xff]
    %v139 = vld [vmem:[#allocation2 + $0x2c8] sm:$0xff]
    %v140 = vld [vmem:[#allocation2 + $0x2d0] sm:$0xff]
    %v141 = vld [vmem:[#allocation2 + $0x2d8] sm:$0xff]
    %v142 = vld [vmem:[#allocation2 + $0x2e0] sm:$0xff]
    %v143 = vld [vmem:[#allocation2 + $0x2e8] sm:$0xff]
    %v144 = vld [vmem:[#allocation2 + $0x2f0] sm:$0xff]
    %v145 = vld [vmem:[#allocation2 + $0x2f8] sm:$0xff]
    %v146 = vld [vmem:[#allocation2 + $0x300] sm:$0xff]
    %v147 = vld [vmem:[#allocation2 + $0x308] sm:$0xff]
    %v148 = vld [vmem:[#allocation2 + $0x310] sm:$0xff]
    %v149 = vld [vmem:[#allocation2 + $0x318] sm:$0xff]
    %v150 = vld [vmem:[#allocation2 + $0x320] sm:$0xff]
    %v151 = vld [vmem:[#allocation2 + $0x328] sm:$0xff]
    %v152 = vld [vmem:[#allocation2 + $0x330] sm:$0xff]
    %v153 = vld [vmem:[#allocation2 + $0x338] sm:$0xff]
    %v154 = vld [vmem:[#allocation2 + $0x340] sm:$0xff]
    %v155 = vld [vmem:[#allocation2 + $0x348] sm:$0xff]
    %v156 = vld [vmem:[#allocation2 + $0x350] sm:$0xff]
    %v157 = vld [vmem:[#allocation2 + $0x358] sm:$0xff]
    %v158 = vld [vmem:[#allocation2 + $0x360] sm:$0xff]
    %v159 = vld [vmem:[#allocation2 + $0x368] sm:$0xff]
    %v160 = vld [vmem:[#allocation2 + $0x370] sm:$0xff]
    %v161 = vld [vmem:[#allocation2 + $0x378] sm:$0xff]
    %v162 = vld [vmem:[#allocation2 + $0x380] sm:$0xff]
    %v163 = vld [vmem:[#allocation2 + $0x388] sm:$0xff]
    %v164 = vld [vmem:[#allocation2 + $0x390] sm:$0xff]
    %v165 = vld [vmem:[#allocation2 + $0x398] sm:$0xff]
    %v166 = vld [vmem:[#allocation2 + $0x3a0] sm:$0xff]
    %v167 = vld [vmem:[#allocation2 + $0x3a8] sm:$0xff]
    %v168 = vld [vmem:[#allocation2 + $0x3b0] sm:$0xff]
    %v169 = vld [vmem:[#allocation2 + $0x3b8] sm:$0xff]
    %v170 = vld [vmem:[#allocation2 + $0x3c0] sm:$0xff]
    %v171 = vld [vmem:[#allocation2 + $0x3c8] sm:$0xff]
    %v172 = vld [vmem:[#allocation2 + $0x3d0] sm:$0xff]
    %v173 = vld [vmem:[#allocation2 + $0x3d8] sm:$0xff]
    %v174 = vld [vmem:[#allocation2 + $0x3e0] sm:$0xff]
    %v175 = vld [vmem:[#allocation2 + $0x3e8] sm:$0xff]
    %v176 = vld [vmem:[#allocation2 + $0x3f0] sm:$0xff]
    %v177 = vld [vmem:[#allocation2 + $0x3f8] sm:$0xff]
    %v178 = vld [vmem:[#allocation2 + $0x400] sm:$0xff]
    %v179 = vld [vmem:[#allocation2 + $0x408] sm:$0xff]
    %v180 = vld [vmem:[#allocation2 + $0x410] sm:$0xff]
    %v181 = vld [vmem:[#allocation2 + $0x418] sm:$0xff]
    %v182 = vld [vmem:[#allocation2 + $0x420] sm:$0xff]
    %v183 = vld [vmem:[#allocation2 + $0x428] sm:$0xff]
    %v184 = vld [vmem:[#allocation2 + $0x430] sm:$0xff]
    %v185 = vld [vmem:[#allocation2 + $0x438] sm:$0xff]
    %v186 = vld [vmem:[#allocation2 + $0x440] sm:$0xff]
    %v187 = vld [vmem:[#allocation2 + $0x448] sm:$0xff]
    %v188 = vld [vmem:[#allocation2 + $0x450] sm:$0xff]
    %v189 = vld [vmem:[#allocation2 + $0x458] sm:$0xff]
    %v190 = vld [vmem:[#allocation2 + $0x460] sm:$0xff]
    %v191 = vld [vmem:[#allocation2 + $0x468] sm:$0xff]
    %v192 = vld [vmem:[#allocation2 + $0x470] sm:$0xff]
    %v193 = vld [vmem:[#allocation2 + $0x478] sm:$0xff]
    %v194 = vld [vmem:[#allocation2 + $0x480] sm:$0xff]
    %v195 = vld [vmem:[#allocation2 + $0x488] sm:$0xff]
    %v196 = vld [vmem:[#allocation2 + $0x490] sm:$0xff]
    %v197 = vld [vmem:[#allocation2 + $0x498] sm:$0xff]
    %v198 = vld [vmem:[#allocation2 + $0x4a0] sm:$0xff]
    %v199 = vld [vmem:[#allocation2 + $0x4a8] sm:$0xff]
    %v200 = vld [vmem:[#allocation2 + $0x4b0] sm:$0xff]
    %v201 = vld [vmem:[#allocation2 + $0x4b8] sm:$0xff]
    %v202 = vld [vmem:[#allocation2 + $0x4c0] sm:$0xff]
    %v203 = vld [vmem:[#allocation2 + $0x4c8] sm:$0xff]
    %v204 = vld [vmem:[#allocation2 + $0x4d0] sm:$0xff]
    %v205 = vld [vmem:[#allocation2 + $0x4d8] sm:$0xff]
    %v206 = vld [vmem:[#allocation2 + $0x4e0] sm:$0xff]
    %v207 = vld [vmem:[#allocation2 + $0x4e8] sm:$0xff]
    %v208 = vld [vmem:[#allocation2 + $0x4f0] sm:$0xff]
    %v209 = vld [vmem:[#allocation2 + $0x4f8] sm:$0xff]
    %v210 = vld [vmem:[#allocation2 + $0x500] sm:$0xff]
    %v211 = vld [vmem:[#allocation2 + $0x508] sm:$0xff]
    %v212 = vld [vmem:[#allocation2 + $0x510] sm:$0xff]
    %v213 = vld [vmem:[#allocation2 + $0x518] sm:$0xff]
    %v214 = vld [vmem:[#allocation2 + $0x520] sm:$0xff]
    %v215 = vld [vmem:[#allocation2 + $0x528] sm:$0xff]
    %v216 = vld [vmem:[#allocation2 + $0x530] sm:$0xff]
    %v217 = vld [vmem:[#allocation2 + $0x538] sm:$0xff]
    %v218 = vld [vmem:[#allocation2 + $0x540] sm:$0xff]
    %v219 = vld [vmem:[#allocation2 + $0x548] sm:$0xff]
    %v220 = vld [vmem:[#allocation2 + $0x550] sm:$0xff]
    %v221 = vld [vmem:[#allocation2 + $0x558] sm:$0xff]
    %v222 = vld [vmem:[#allocation2 + $0x560] sm:$0xff]
    %v223 = vld [vmem:[#allocation2 + $0x568] sm:$0xff]
    %v224 = vld [vmem:[#allocation2 + $0x570] sm:$0xff]
    %v225 = vld [vmem:[#allocation2 + $0x578] sm:$0xff]
    %v226 = vld [vmem:[#allocation2 + $0x580] sm:$0xff]
    %v227 = vld [vmem:[#allocation2 + $0x588] sm:$0xff]
    %v228 = vld [vmem:[#allocation2 + $0x590] sm:$0xff]
    %v229 = vld [vmem:[#allocation2 + $0x598] sm:$0xff]
    %v230 = vld [vmem:[#allocation2 + $0x5a0] sm:$0xff]
    %v231 = vld [vmem:[#allocation2 + $0x5a8] sm:$0xff]
    %v232 = vld [vmem:[#allocation2 + $0x5b0] sm:$0xff]
    %v233 = vld [vmem:[#allocation2 + $0x5b8] sm:$0xff]
    %v234 = vld [vmem:[#allocation2 + $0x5c0] sm:$0xff]
    %v235 = vld [vmem:[#allocation2 + $0x5c8] sm:$0xff]
    %v236 = vld [vmem:[#allocation2 + $0x5d0] sm:$0xff]
    %v237 = vld [vmem:[#allocation2 + $0x5d8] sm:$0xff]
    %v238 = vld [vmem:[#allocation2 + $0x5e0] sm:$0xff]
    %v239 = vld [vmem:[#allocation2 + $0x5e8] sm:$0xff]
    %v240 = vld [vmem:[#allocation2 + $0x5f0] sm:$0xff]
    %v241 = vld [vmem:[#allocation2 + $0x5f8] sm:$0xff]
    %v242 = vld [vmem:[#allocation2 + $0x600] sm:$0xff]
    %v243 = vld [vmem:[#allocation2 + $0x608] sm:$0xff]
    %v244 = vld [vmem:[#allocation2 + $0x610] sm:$0xff]
    %v245 = vld [vmem:[#allocation2 + $0x618] sm:$0xff]
    %v246 = vld [vmem:[#allocation2 + $0x620] sm:$0xff]
    %v247 = vld [vmem:[#allocation2 + $0x628] sm:$0xff]
    %v248 = vld [vmem:[#allocation2 + $0x630] sm:$0xff]
    %v249 = vld [vmem:[#allocation2 + $0x638] sm:$0xff]
    %v250 = vld [vmem:[#allocation2 + $0x640] sm:$0xff]
    %v251 = vld [vmem:[#allocation2 + $0x648] sm:$0xff]
    %v252 = vld [vmem:[#allocation2 + $0x650] sm:$0xff]
    %v253 = vld [vmem:[#allocation2 + $0x658] sm:$0xff]
    %v254 = vld [vmem:[#allocation2 + $0x660] sm:$0xff]
    %v255 = vld [vmem:[#allocation2 + $0x668] sm:$0xff]
    %v256 = vld [vmem:[#allocation2 + $0x670] sm:$0xff]
    %v257 = vld [vmem:[#allocation2 + $0x678] sm:$0xff]
    %v258 = vld [vmem:[#allocation2 + $0x680] sm:$0xff]
    %v259 = vld [vmem:[#allocation2 + $0x688] sm:$0xff]
    %v260 = vld [vmem:[#allocation2 + $0x690] sm:$0xff]
    %v261 = vld [vmem:[#allocation2 + $0x698] sm:$0xff]
    %v262 = vld [vmem:[#allocation2 + $0x6a0] sm:$0xff]
    %v263 = vld [vmem:[#allocation2 + $0x6a8] sm:$0xff]
    %v264 = vld [vmem:[#allocation2 + $0x6b0] sm:$0xff]
    %v265 = vld [vmem:[#allocation2 + $0x6b8] sm:$0xff]
    %v266 = vld [vmem:[#allocation2 + $0x6c0] sm:$0xff]
    %v267 = vld [vmem:[#allocation2 + $0x6c8] sm:$0xff]
    %v268 = vld [vmem:[#allocation2 + $0x6d0] sm:$0xff]
    %v269 = vld [vmem:[#allocation2 + $0x6d8] sm:$0xff]
    %v270 = vld [vmem:[#allocation2 + $0x6e0] sm:$0xff]
    %v271 = vld [vmem:[#allocation2 + $0x6e8] sm:$0xff]
    %v272 = vld [vmem:[#allocation2 + $0x6f0] sm:$0xff]
    %v273 = vld [vmem:[#allocation2 + $0x6f8] sm:$0xff]
    %v274 = vld [vmem:[#allocation2 + $0x700] sm:$0xff]
    %v275 = vld [vmem:[#allocation2 + $0x708] sm:$0xff]
    %v276 = vld [vmem:[#allocation2 + $0x710] sm:$0xff]
    %v277 = vld [vmem:[#allocation2 + $0x718] sm:$0xff]
    %v278 = vld [vmem:[#allocation2 + $0x720] sm:$0xff]
    %v279 = vld [vmem:[#allocation2 + $0x728] sm:$0xff]
    %v280 = vld [vmem:[#allocation2 + $0x730] sm:$0xff]
    %v281 = vld [vmem:[#allocation2 + $0x738] sm:$0xff]
    %v282 = vld [vmem:[#allocation2 + $0x740] sm:$0xff]
    %v283 = vld [vmem:[#allocation2 + $0x748] sm:$0xff]
    %v284 = vld [vmem:[#allocation2 + $0x750] sm:$0xff]
    %v285 = vld [vmem:[#allocation2 + $0x758] sm:$0xff]
    %v286 = vld [vmem:[#allocation2 + $0x760] sm:$0xff]
    %v287 = vld [vmem:[#allocation2 + $0x768] sm:$0xff]
    %v288 = vld [vmem:[#allocation2 + $0x770] sm:$0xff]
    %v289 = vld [vmem:[#allocation2 + $0x778] sm:$0xff]
    %v290 = vld [vmem:[#allocation2 + $0x780] sm:$0xff]
    %v291 = vld [vmem:[#allocation2 + $0x788] sm:$0xff]
    %v292 = vld [vmem:[#allocation2 + $0x790] sm:$0xff]
    %v293 = vld [vmem:[#allocation2 + $0x798] sm:$0xff]
    %v294 = vld [vmem:[#allocation2 + $0x7a0] sm:$0xff]
    %v295 = vld [vmem:[#allocation2 + $0x7a8] sm:$0xff]
    %v296 = vld [vmem:[#allocation2 + $0x7b0] sm:$0xff]
    %v297 = vld [vmem:[#allocation2 + $0x7b8] sm:$0xff]
    %v298 = vld [vmem:[#allocation2 + $0x7c0] sm:$0xff]
    %v299 = vld [vmem:[#allocation2 + $0x7c8] sm:$0xff]
    %v300 = vld [vmem:[#allocation2 + $0x7d0] sm:$0xff]
    %v301 = vld [vmem:[#allocation2 + $0x7d8] sm:$0xff]
    %v302 = vld [vmem:[#allocation2 + $0x7e0] sm:$0xff]
    %v303 = vld [vmem:[#allocation2 + $0x7e8] sm:$0xff]
    %v304 = vld [vmem:[#allocation2 + $0x7f0] sm:$0xff]
    %v305 = vld [vmem:[#allocation2 + $0x7f8] sm:$0xff]
    %v306 = vld [vmem:[%s3] sm:$0xff]
    %v307 = vld [vmem:[%s3 + $0x8] sm:$0xff]
    %309 = vset.pattern.permute.xlu0 0
    %310 = vperm.xlu0 %309, %v306
    %v311 = vpop.permute.xlu0 %310
    %314 = vset.pattern.permute.xlu0 0
    %315 = vperm.xlu0 %314, %v307
    %v316 = vpop.permute.xlu0 %315
    %318 = vmatpush.xpose.msra.mxu0 %v65
    %319 = vmatpush.xpose.msra.mxu0 %v64
    %320 = vmatpush.xpose.msra.mxu0 %v63
    %321 = vmatpush.xpose.msra.mxu0 %v62
    %322 = vmatpush.xpose.msra.mxu0 %v61
    %323 = vmatpush.xpose.msra.mxu0 %v60
    %324 = vmatpush.xpose.msra.mxu0 %v59
    %325 = vmatpush.xpose.msra.mxu0 %v58
    %326 = vmatpush.xpose.msra.mxu0 %v57
    %327 = vmatpush.xpose.msra.mxu0 %v56
    %328 = vmatpush.xpose.msra.mxu0 %v55
    %329 = vmatpush.xpose.msra.mxu0 %v54
    %330 = vmatpush.xpose.msra.mxu0 %v53
    %331 = vmatpush.xpose.msra.mxu0 %v52
    %332 = vmatpush.xpose.msra.mxu0 %v51
    %333 = vmatpush.xpose.msra.mxu0 %v50
    %334 = vmatmul.f32.gmra.mxu0 %v48
    %v335 = vpop.f32.mrf.mxu0
    %v336 = vadd.f32 %v311, %v335
    %337 = vmatmul.f32.gmra.mxu0 %v49
    %v338 = vpop.f32.mrf.mxu0
    %v339 = vadd.f32 %v316, %v338
    %340 = vdwg.mxu0
    %341 = vmatpush.xpose.msra.mxu0 %v81
    %342 = vmatpush.xpose.msra.mxu0 %v80
    %343 = vmatpush.xpose.msra.mxu0 %v79
    %344 = vmatpush.xpose.msra.mxu0 %v78
    %345 = vmatpush.xpose.msra.mxu0 %v77
    %346 = vmatpush.xpose.msra.mxu0 %v76
    %347 = vmatpush.xpose.msra.mxu0 %v75
    %348 = vmatpush.xpose.msra.mxu0 %v74
    %349 = vmatpush.xpose.msra.mxu0 %v73
    %350 = vmatpush.xpose.msra.mxu0 %v72
    %351 = vmatpush.xpose.msra.mxu0 %v71
    %352 = vmatpush.xpose.msra.mxu0 %v70
    %353 = vmatpush.xpose.msra.mxu0 %v69
    %354 = vmatpush.xpose.msra.mxu0 %v68
    %355 = vmatpush.xpose.msra.mxu0 %v67
    %356 = vmatpush.xpose.msra.mxu0 %v66
    %357 = vmatmul.f32.gmra.mxu0 %v48
    %v358 = vpop.f32.mrf.mxu0
    %v359 = vadd.f32 %v311, %v358
    %360 = vmatmul.f32.gmra.mxu0 %v49
    %v361 = vpop.f32.mrf.mxu0
    %v362 = vadd.f32 %v316, %v361
    %363 = vdwg.mxu0
    %364 = vmatpush.xpose.msra.mxu0 %v97
    %365 = vmatpush.xpose.msra.mxu0 %v96
    %366 = vmatpush.xpose.msra.mxu0 %v95
    %367 = vmatpush.xpose.msra.mxu0 %v94
    %368 = vmatpush.xpose.msra.mxu0 %v93
    %369 = vmatpush.xpose.msra.mxu0 %v92
    %370 = vmatpush.xpose.msra.mxu0 %v91
    %371 = vmatpush.xpose.msra.mxu0 %v90
    %372 = vmatpush.xpose.msra.mxu0 %v89
    %373 = vmatpush.xpose.msra.mxu0 %v88
    %374 = vmatpush.xpose.msra.mxu0 %v87
    %375 = vmatpush.xpose.msra.mxu0 %v86
    %376 = vmatpush.xpose.msra.mxu0 %v85
    %377 = vmatpush.xpose.msra.mxu0 %v84
    %378 = vmatpush.xpose.msra.mxu0 %v83
    %379 = vmatpush.xpose.msra.mxu0 %v82
    %380 = vmatmul.f32.gmra.mxu0 %v48
    %v381 = vpop.f32.mrf.mxu0
    %v382 = vadd.f32 %v311, %v381
    %383 = vmatmul.f32.gmra.mxu0 %v49
    %v384 = vpop.f32.mrf.mxu0
    %v385 = vadd.f32 %v316, %v384
    %386 = vdwg.mxu0
    %387 = vmatpush.xpose.msra.mxu0 %v113
    %388 = vmatpush.xpose.msra.mxu0 %v112
    %389 = vmatpush.xpose.msra.mxu0 %v111
    %390 = vmatpush.xpose.msra.mxu0 %v110
    %391 = vmatpush.xpose.msra.mxu0 %v109
    %392 = vmatpush.xpose.msra.mxu0 %v108
    %393 = vmatpush.xpose.msra.mxu0 %v107
    %394 = vmatpush.xpose.msra.mxu0 %v106
    %395 = vmatpush.xpose.msra.mxu0 %v105
    %396 = vmatpush.xpose.msra.mxu0 %v104
    %397 = vmatpush.xpose.msra.mxu0 %v103
    %398 = vmatpush.xpose.msra.mxu0 %v102
    %399 = vmatpush.xpose.msra.mxu0 %v101
    %400 = vmatpush.xpose.msra.mxu0 %v100
    %401 = vmatpush.xpose.msra.mxu0 %v99
    %402 = vmatpush.xpose.msra.mxu0 %v98
    %403 = vmatmul.f32.gmra.mxu0 %v48
    %v404 = vpop.f32.mrf.mxu0
    %v405 = vadd.f32 %v311, %v404
    %406 = vmatmul.f32.gmra.mxu0 %v49
    %v407 = vpop.f32.mrf.mxu0
    %v408 = vadd.f32 %v316, %v407
    %409 = vdwg.mxu0
    %410 = vmatpush.xpose.msra.mxu0 %v129
    %411 = vmatpush.xpose.msra.mxu0 %v128
    %412 = vmatpush.xpose.msra.mxu0 %v127
    %413 = vmatpush.xpose.msra.mxu0 %v126
    %414 = vmatpush.xpose.msra.mxu0 %v125
    %415 = vmatpush.xpose.msra.mxu0 %v124
    %416 = vmatpush.xpose.msra.mxu0 %v123
    %417 = vmatpush.xpose.msra.mxu0 %v122
    %418 = vmatpush.xpose.msra.mxu0 %v121
    %419 = vmatpush.xpose.msra.mxu0 %v120
    %420 = vmatpush.xpose.msra.mxu0 %v119
    %421 = vmatpush.xpose.msra.mxu0 %v118
    %422 = vmatpush.xpose.msra.mxu0 %v117
    %423 = vmatpush.xpose.msra.mxu0 %v116
    %424 = vmatpush.xpose.msra.mxu0 %v115
    %425 = vmatpush.xpose.msra.mxu0 %v114
    %426 = vmatmul.f32.gmra.mxu0 %v48
    %v427 = vpop.f32.mrf.mxu0
    %v428 = vadd.f32 %v311, %v427
    %429 = vmatmul.f32.gmra.mxu0 %v49
    %v430 = vpop.f32.mrf.mxu0
    %v431 = vadd.f32 %v316, %v430
    %432 = vdwg.mxu0
    %433 = vmatpush.xpose.msra.mxu0 %v145
    %434 = vmatpush.xpose.msra.mxu0 %v144
    %435 = vmatpush.xpose.msra.mxu0 %v143
    %436 = vmatpush.xpose.msra.mxu0 %v142
    %437 = vmatpush.xpose.msra.mxu0 %v141
    %438 = vmatpush.xpose.msra.mxu0 %v140
    %439 = vmatpush.xpose.msra.mxu0 %v139
    %440 = vmatpush.xpose.msra.mxu0 %v138
    %441 = vmatpush.xpose.msra.mxu0 %v137
    %442 = vmatpush.xpose.msra.mxu0 %v136
    %443 = vmatpush.xpose.msra.mxu0 %v135
    %444 = vmatpush.xpose.msra.mxu0 %v134
    %445 = vmatpush.xpose.msra.mxu0 %v133
    %446 = vmatpush.xpose.msra.mxu0 %v132
    %447 = vmatpush.xpose.msra.mxu0 %v131
    %448 = vmatpush.xpose.msra.mxu0 %v130
    %449 = vmatmul.f32.gmra.mxu0 %v48
    %v450 = vpop.f32.mrf.mxu0
    %v451 = vadd.f32 %v311, %v450
    %452 = vmatmul.f32.gmra.mxu0 %v49
    %v453 = vpop.f32.mrf.mxu0
    %v454 = vadd.f32 %v316, %v453
    %455 = vdwg.mxu0
    %456 = vmatpush.xpose.msra.mxu0 %v161
    %457 = vmatpush.xpose.msra.mxu0 %v160
    %458 = vmatpush.xpose.msra.mxu0 %v159
    %459 = vmatpush.xpose.msra.mxu0 %v158
    %460 = vmatpush.xpose.msra.mxu0 %v157
    %461 = vmatpush.xpose.msra.mxu0 %v156
    %462 = vmatpush.xpose.msra.mxu0 %v155
    %463 = vmatpush.xpose.msra.mxu0 %v154
    %464 = vmatpush.xpose.msra.mxu0 %v153
    %465 = vmatpush.xpose.msra.mxu0 %v152
    %466 = vmatpush.xpose.msra.mxu0 %v151
    %467 = vmatpush.xpose.msra.mxu0 %v150
    %468 = vmatpush.xpose.msra.mxu0 %v149
    %469 = vmatpush.xpose.msra.mxu0 %v148
    %470 = vmatpush.xpose.msra.mxu0 %v147
    %471 = vmatpush.xpose.msra.mxu0 %v146
    %472 = vmatmul.f32.gmra.mxu0 %v48
    %v473 = vpop.f32.mrf.mxu0
    %v474 = vadd.f32 %v311, %v473
    %475 = vmatmul.f32.gmra.mxu0 %v49
    %v476 = vpop.f32.mrf.mxu0
    %v477 = vadd.f32 %v316, %v476
    %478 = vdwg.mxu0
    %479 = vmatpush.xpose.msra.mxu0 %v177
    %480 = vmatpush.xpose.msra.mxu0 %v176
    %481 = vmatpush.xpose.msra.mxu0 %v175
    %482 = vmatpush.xpose.msra.mxu0 %v174
    %483 = vmatpush.xpose.msra.mxu0 %v173
    %484 = vmatpush.xpose.msra.mxu0 %v172
    %485 = vmatpush.xpose.msra.mxu0 %v171
    %486 = vmatpush.xpose.msra.mxu0 %v170
    %487 = vmatpush.xpose.msra.mxu0 %v169
    %488 = vmatpush.xpose.msra.mxu0 %v168
    %489 = vmatpush.xpose.msra.mxu0 %v167
    %490 = vmatpush.xpose.msra.mxu0 %v166
    %491 = vmatpush.xpose.msra.mxu0 %v165
    %492 = vmatpush.xpose.msra.mxu0 %v164
    %493 = vmatpush.xpose.msra.mxu0 %v163
    %494 = vmatpush.xpose.msra.mxu0 %v162
    %495 = vmatmul.f32.gmra.mxu0 %v48
    %v496 = vpop.f32.mrf.mxu0
    %v497 = vadd.f32 %v311, %v496
    %498 = vmatmul.f32.gmra.mxu0 %v49
    %v499 = vpop.f32.mrf.mxu0
    %v500 = vadd.f32 %v316, %v499
    %501 = vdwg.mxu0
    %502 = vmatpush.xpose.msra.mxu0 %v193
    %503 = vmatpush.xpose.msra.mxu0 %v192
    %504 = vmatpush.xpose.msra.mxu0 %v191
    %505 = vmatpush.xpose.msra.mxu0 %v190
    %506 = vmatpush.xpose.msra.mxu0 %v189
    %507 = vmatpush.xpose.msra.mxu0 %v188
    %508 = vmatpush.xpose.msra.mxu0 %v187
    %509 = vmatpush.xpose.msra.mxu0 %v186
    %510 = vmatpush.xpose.msra.mxu0 %v185
    %511 = vmatpush.xpose.msra.mxu0 %v184
    %512 = vmatpush.xpose.msra.mxu0 %v183
    %513 = vmatpush.xpose.msra.mxu0 %v182
    %514 = vmatpush.xpose.msra.mxu0 %v181
    %515 = vmatpush.xpose.msra.mxu0 %v180
    %516 = vmatpush.xpose.msra.mxu0 %v179
    %517 = vmatpush.xpose.msra.mxu0 %v178
    %518 = vmatmul.f32.gmra.mxu0 %v48
    %v519 = vpop.f32.mrf.mxu0
    %v520 = vadd.f32 %v311, %v519
    %521 = vmatmul.f32.gmra.mxu0 %v49
    %v522 = vpop.f32.mrf.mxu0
    %v523 = vadd.f32 %v316, %v522
    %524 = vdwg.mxu0
    %525 = vmatpush.xpose.msra.mxu0 %v209
    %526 = vmatpush.xpose.msra.mxu0 %v208
    %527 = vmatpush.xpose.msra.mxu0 %v207
    %528 = vmatpush.xpose.msra.mxu0 %v206
    %529 = vmatpush.xpose.msra.mxu0 %v205
    %530 = vmatpush.xpose.msra.mxu0 %v204
    %531 = vmatpush.xpose.msra.mxu0 %v203
    %532 = vmatpush.xpose.msra.mxu0 %v202
    %533 = vmatpush.xpose.msra.mxu0 %v201
    %534 = vmatpush.xpose.msra.mxu0 %v200
    %535 = vmatpush.xpose.msra.mxu0 %v199
    %536 = vmatpush.xpose.msra.mxu0 %v198
    %537 = vmatpush.xpose.msra.mxu0 %v197
    %538 = vmatpush.xpose.msra.mxu0 %v196
    %539 = vmatpush.xpose.msra.mxu0 %v195
    %540 = vmatpush.xpose.msra.mxu0 %v194
    %541 = vmatmul.f32.gmra.mxu0 %v48
    %v542 = vpop.f32.mrf.mxu0
    %v543 = vadd.f32 %v311, %v542
    %544 = vmatmul.f32.gmra.mxu0 %v49
    %v545 = vpop.f32.mrf.mxu0
    %v546 = vadd.f32 %v316, %v545
    %547 = vdwg.mxu0
    %548 = vmatpush.xpose.msra.mxu0 %v225
    %549 = vmatpush.xpose.msra.mxu0 %v224
    %550 = vmatpush.xpose.msra.mxu0 %v223
    %551 = vmatpush.xpose.msra.mxu0 %v222
    %552 = vmatpush.xpose.msra.mxu0 %v221
    %553 = vmatpush.xpose.msra.mxu0 %v220
    %554 = vmatpush.xpose.msra.mxu0 %v219
    %555 = vmatpush.xpose.msra.mxu0 %v218
    %556 = vmatpush.xpose.msra.mxu0 %v217
    %557 = vmatpush.xpose.msra.mxu0 %v216
    %558 = vmatpush.xpose.msra.mxu0 %v215
    %559 = vmatpush.xpose.msra.mxu0 %v214
    %560 = vmatpush.xpose.msra.mxu0 %v213
    %561 = vmatpush.xpose.msra.mxu0 %v212
    %562 = vmatpush.xpose.msra.mxu0 %v211
    %563 = vmatpush.xpose.msra.mxu0 %v210
    %564 = vmatmul.f32.gmra.mxu0 %v48
    %v565 = vpop.f32.mrf.mxu0
    %v566 = vadd.f32 %v311, %v565
    %567 = vmatmul.f32.gmra.mxu0 %v49
    %v568 = vpop.f32.mrf.mxu0
    %v569 = vadd.f32 %v316, %v568
    %570 = vdwg.mxu0
    %571 = vmatpush.xpose.msra.mxu0 %v241
    %572 = vmatpush.xpose.msra.mxu0 %v240
    %573 = vmatpush.xpose.msra.mxu0 %v239
    %574 = vmatpush.xpose.msra.mxu0 %v238
    %575 = vmatpush.xpose.msra.mxu0 %v237
    %576 = vmatpush.xpose.msra.mxu0 %v236
    %577 = vmatpush.xpose.msra.mxu0 %v235
    %578 = vmatpush.xpose.msra.mxu0 %v234
    %579 = vmatpush.xpose.msra.mxu0 %v233
    %580 = vmatpush.xpose.msra.mxu0 %v232
    %581 = vmatpush.xpose.msra.mxu0 %v231
    %582 = vmatpush.xpose.msra.mxu0 %v230
    %583 = vmatpush.xpose.msra.mxu0 %v229
    %584 = vmatpush.xpose.msra.mxu0 %v228
    %585 = vmatpush.xpose.msra.mxu0 %v227
    %586 = vmatpush.xpose.msra.mxu0 %v226
    %587 = vmatmul.f32.gmra.mxu0 %v48
    %v588 = vpop.f32.mrf.mxu0
    %v589 = vadd.f32 %v311, %v588
    %590 = vmatmul.f32.gmra.mxu0 %v49
    %v591 = vpop.f32.mrf.mxu0
    %v592 = vadd.f32 %v316, %v591
    %593 = vdwg.mxu0
    %594 = vmatpush.xpose.msra.mxu0 %v257
    %595 = vmatpush.xpose.msra.mxu0 %v256
    %596 = vmatpush.xpose.msra.mxu0 %v255
    %597 = vmatpush.xpose.msra.mxu0 %v254
    %598 = vmatpush.xpose.msra.mxu0 %v253
    %599 = vmatpush.xpose.msra.mxu0 %v252
    %600 = vmatpush.xpose.msra.mxu0 %v251
    %601 = vmatpush.xpose.msra.mxu0 %v250
    %602 = vmatpush.xpose.msra.mxu0 %v249
    %603 = vmatpush.xpose.msra.mxu0 %v248
    %604 = vmatpush.xpose.msra.mxu0 %v247
    %605 = vmatpush.xpose.msra.mxu0 %v246
    %606 = vmatpush.xpose.msra.mxu0 %v245
    %607 = vmatpush.xpose.msra.mxu0 %v244
    %608 = vmatpush.xpose.msra.mxu0 %v243
    %609 = vmatpush.xpose.msra.mxu0 %v242
    %610 = vmatmul.f32.gmra.mxu0 %v48
    %v611 = vpop.f32.mrf.mxu0
    %v612 = vadd.f32 %v311, %v611
    %613 = vmatmul.f32.gmra.mxu0 %v49
    %v614 = vpop.f32.mrf.mxu0
    %v615 = vadd.f32 %v316, %v614
    %616 = vdwg.mxu0
    %617 = vmatpush.xpose.msra.mxu0 %v273
    %618 = vmatpush.xpose.msra.mxu0 %v272
    %619 = vmatpush.xpose.msra.mxu0 %v271
    %620 = vmatpush.xpose.msra.mxu0 %v270
    %621 = vmatpush.xpose.msra.mxu0 %v269
    %622 = vmatpush.xpose.msra.mxu0 %v268
    %623 = vmatpush.xpose.msra.mxu0 %v267
    %624 = vmatpush.xpose.msra.mxu0 %v266
    %625 = vmatpush.xpose.msra.mxu0 %v265
    %626 = vmatpush.xpose.msra.mxu0 %v264
    %627 = vmatpush.xpose.msra.mxu0 %v263
    %628 = vmatpush.xpose.msra.mxu0 %v262
    %629 = vmatpush.xpose.msra.mxu0 %v261
    %630 = vmatpush.xpose.msra.mxu0 %v260
    %631 = vmatpush.xpose.msra.mxu0 %v259
    %632 = vmatpush.xpose.msra.mxu0 %v258
    %633 = vmatmul.f32.gmra.mxu0 %v48
    %v634 = vpop.f32.mrf.mxu0
    %v635 = vadd.f32 %v311, %v634
    %636 = vmatmul.f32.gmra.mxu0 %v49
    %v637 = vpop.f32.mrf.mxu0
    %v638 = vadd.f32 %v316, %v637
    %639 = vdwg.mxu0
    %640 = vmatpush.xpose.msra.mxu0 %v289
    %641 = vmatpush.xpose.msra.mxu0 %v288
    %642 = vmatpush.xpose.msra.mxu0 %v287
    %643 = vmatpush.xpose.msra.mxu0 %v286
    %644 = vmatpush.xpose.msra.mxu0 %v285
    %645 = vmatpush.xpose.msra.mxu0 %v284
    %646 = vmatpush.xpose.msra.mxu0 %v283
    %647 = vmatpush.xpose.msra.mxu0 %v282
    %648 = vmatpush.xpose.msra.mxu0 %v281
    %649 = vmatpush.xpose.msra.mxu0 %v280
    %650 = vmatpush.xpose.msra.mxu0 %v279
    %651 = vmatpush.xpose.msra.mxu0 %v278
    %652 = vmatpush.xpose.msra.mxu0 %v277
    %653 = vmatpush.xpose.msra.mxu0 %v276
    %654 = vmatpush.xpose.msra.mxu0 %v275
    %655 = vmatpush.xpose.msra.mxu0 %v274
    %656 = vmatmul.f32.gmra.mxu0 %v48
    %v657 = vpop.f32.mrf.mxu0
    %v658 = vadd.f32 %v311, %v657
    %659 = vmatmul.f32.gmra.mxu0 %v49
    %v660 = vpop.f32.mrf.mxu0
    %v661 = vadd.f32 %v316, %v660
    %662 = vdwg.mxu0
    %663 = vmatpush.xpose.msra.mxu0 %v305
    %664 = vmatpush.xpose.msra.mxu0 %v304
    %665 = vmatpush.xpose.msra.mxu0 %v303
    %666 = vmatpush.xpose.msra.mxu0 %v302
    %667 = vmatpush.xpose.msra.mxu0 %v301
    %668 = vmatpush.xpose.msra.mxu0 %v300
    %669 = vmatpush.xpose.msra.mxu0 %v299
    %670 = vmatpush.xpose.msra.mxu0 %v298
    %671 = vmatpush.xpose.msra.mxu0 %v297
    %672 = vmatpush.xpose.msra.mxu0 %v296
    %673 = vmatpush.xpose.msra.mxu0 %v295
    %674 = vmatpush.xpose.msra.mxu0 %v294
    %675 = vmatpush.xpose.msra.mxu0 %v293
    %676 = vmatpush.xpose.msra.mxu0 %v292
    %677 = vmatpush.xpose.msra.mxu0 %v291
    %678 = vmatpush.xpose.msra.mxu0 %v290
    %679 = vmatmul.f32.gmra.mxu0 %v48
    %v680 = vpop.f32.mrf.mxu0
    %v681 = vadd.f32 %v311, %v680
    %682 = vmatmul.f32.gmra.mxu0 %v49
    %v683 = vpop.f32.mrf.mxu0
    %v684 = vadd.f32 %v316, %v683
    %685 = vdwg.mxu0
    %v686 = vxor.u32 %v336, 2147483648
    %v687 = vxor.u32 %v359, 2147483648
    %v688 = vxor.u32 %v382, 2147483648
    %v689 = vxor.u32 %v405, 2147483648
    %v690 = vxor.u32 %v428, 2147483648
    %v691 = vxor.u32 %v451, 2147483648
    %v692 = vxor.u32 %v474, 2147483648
    %v693 = vxor.u32 %v497, 2147483648
    %v694 = vxor.u32 %v520, 2147483648
    %v695 = vxor.u32 %v543, 2147483648
    %v696 = vxor.u32 %v566, 2147483648
    %v697 = vxor.u32 %v589, 2147483648
    %v698 = vxor.u32 %v612, 2147483648
    %v699 = vxor.u32 %v635, 2147483648
    %v700 = vxor.u32 %v658, 2147483648
    %v701 = vxor.u32 %v681, 2147483648
    %v702 = vxor.u32 %v339, 2147483648
    %v703 = vxor.u32 %v362, 2147483648
    %v704 = vxor.u32 %v385, 2147483648
    %v705 = vxor.u32 %v408, 2147483648
    %v706 = vxor.u32 %v431, 2147483648
    %v707 = vxor.u32 %v454, 2147483648
    %v708 = vxor.u32 %v477, 2147483648
    %v709 = vxor.u32 %v500, 2147483648
    %v710 = vxor.u32 %v523, 2147483648
    %v711 = vxor.u32 %v546, 2147483648
    %v712 = vxor.u32 %v569, 2147483648
    %v713 = vxor.u32 %v592, 2147483648
    %v714 = vxor.u32 %v615, 2147483648
    %v715 = vxor.u32 %v638, 2147483648
    %v716 = vxor.u32 %v661, 2147483648
    %v717 = vxor.u32 %v684, 2147483648
    %v718 = vmul.f32 %v686, 1.442695
    %v719 = vpow.pop %v718
    %v720 = vmul.f32 %v687, 1.442695
    %v721 = vpow.pop %v720
    %v722 = vmul.f32 %v688, 1.442695
    %v723 = vpow.pop %v722
    %v724 = vmul.f32 %v689, 1.442695
    %v725 = vpow.pop %v724
    %v726 = vmul.f32 %v690, 1.442695
    %v727 = vpow.pop %v726
    %v728 = vmul.f32 %v691, 1.442695
    %v729 = vpow.pop %v728
    %v730 = vmul.f32 %v692, 1.442695
    %v731 = vpow.pop %v730
    %v732 = vmul.f32 %v693, 1.442695
    %v733 = vpow.pop %v732
    %v734 = vmul.f32 %v694, 1.442695
    %v735 = vpow.pop %v734
    %v736 = vmul.f32 %v695, 1.442695
    %v737 = vpow.pop %v736
    %v738 = vmul.f32 %v696, 1.442695
    %v739 = vpow.pop %v738
    %v740 = vmul.f32 %v697, 1.442695
    %v741 = vpow.pop %v740
    %v742 = vmul.f32 %v698, 1.442695
    %v743 = vpow.pop %v742
    %v744 = vmul.f32 %v699, 1.442695
    %v745 = vpow.pop %v744
    %v746 = vmul.f32 %v700, 1.442695
    %v747 = vpow.pop %v746
    %v748 = vmul.f32 %v701, 1.442695
    %v749 = vpow.pop %v748
    %v750 = vmul.f32 %v702, 1.442695
    %v751 = vpow.pop %v750
    %v752 = vmul.f32 %v703, 1.442695
    %v753 = vpow.pop %v752
    %v754 = vmul.f32 %v704, 1.442695
    %v755 = vpow.pop %v754
    %v756 = vmul.f32 %v705, 1.442695
    %v757 = vpow.pop %v756
    %v758 = vmul.f32 %v706, 1.442695
    %v759 = vpow.pop %v758
    %v760 = vmul.f32 %v707, 1.442695
    %v761 = vpow.pop %v760
    %v762 = vmul.f32 %v708, 1.442695
    %v763 = vpow.pop %v762
    %v764 = vmul.f32 %v709, 1.442695
    %v765 = vpow.pop %v764
    %v766 = vmul.f32 %v710, 1.442695
    %v767 = vpow.pop %v766
    %v768 = vmul.f32 %v711, 1.442695
    %v769 = vpow.pop %v768
    %v770 = vmul.f32 %v712, 1.442695
    %v771 = vpow.pop %v770
    %v772 = vmul.f32 %v713, 1.442695
    %v773 = vpow.pop %v772
    %v774 = vmul.f32 %v714, 1.442695
    %v775 = vpow.pop %v774
    %v776 = vmul.f32 %v715, 1.442695
    %v777 = vpow.pop %v776
    %v778 = vmul.f32 %v716, 1.442695
    %v779 = vpow.pop %v778
    %v780 = vmul.f32 %v717, 1.442695
    %v781 = vpow.pop %v780
    %v782 = vadd.f32 %v719, 1.0
    %v783 = vadd.f32 %v721, 1.0
    %v784 = vadd.f32 %v723, 1.0
    %v785 = vadd.f32 %v725, 1.0
    %v786 = vadd.f32 %v727, 1.0
    %v787 = vadd.f32 %v729, 1.0
    %v788 = vadd.f32 %v731, 1.0
    %v789 = vadd.f32 %v733, 1.0
    %v790 = vadd.f32 %v735, 1.0
    %v791 = vadd.f32 %v737, 1.0
    %v792 = vadd.f32 %v739, 1.0
    %v793 = vadd.f32 %v741, 1.0
    %v794 = vadd.f32 %v743, 1.0
    %v795 = vadd.f32 %v745, 1.0
    %v796 = vadd.f32 %v747, 1.0
    %v797 = vadd.f32 %v749, 1.0
    %v798 = vadd.f32 %v751, 1.0
    %v799 = vadd.f32 %v753, 1.0
    %v800 = vadd.f32 %v755, 1.0
    %v801 = vadd.f32 %v757, 1.0
    %v802 = vadd.f32 %v759, 1.0
    %v803 = vadd.f32 %v761, 1.0
    %v804 = vadd.f32 %v763, 1.0
    %v805 = vadd.f32 %v765, 1.0
    %v806 = vadd.f32 %v767, 1.0
    %v807 = vadd.f32 %v769, 1.0
    %v808 = vadd.f32 %v771, 1.0
    %v809 = vadd.f32 %v773, 1.0
    %v810 = vadd.f32 %v775, 1.0
    %v811 = vadd.f32 %v777, 1.0
    %v812 = vadd.f32 %v779, 1.0
    %v813 = vadd.f32 %v781, 1.0
    %v814 = vrcp.pop %v782
    %v815 = vmul.f32 %v782, %v814
    %v816 = vsub.f32 1.0, %v815
    %v817 = vmul.f32 %v814, %v816
    %v818 = vadd.f32 %v814, %v817
    %vm819 = vweird.f32 %v782
    %vm820 = vweird.f32 %v814
    %vm821 = vmor %vm819, %vm820
    %v822 = vsel %vm821, %v814, %v818
    %v823 = vand.u32 2147483647, %v782
    %vm824 = vcmp.eq.f32.partialorder %v823, 8.507059e+37
    %v825 = vand.u32 %v782, 2147483648
    %v826 = vor.u32 1.1754944e-38, %v825
    %v827 = vsel %vm824, %v826, %v822
    %v828 = vmul.f32 1.0, %v827
    %v829 = vrcp.pop %v783
    %v830 = vmul.f32 %v783, %v829
    %v831 = vsub.f32 1.0, %v830
    %v832 = vmul.f32 %v829, %v831
    %v833 = vadd.f32 %v829, %v832
    %vm834 = vweird.f32 %v783
    %vm835 = vweird.f32 %v829
    %vm836 = vmor %vm834, %vm835
    %v837 = vsel %vm836, %v829, %v833
    %v838 = vand.u32 2147483647, %v783
    %vm839 = vcmp.eq.f32.partialorder %v838, 8.507059e+37
    %v840 = vand.u32 %v783, 2147483648
    %v841 = vor.u32 1.1754944e-38, %v840
    %v842 = vsel %vm839, %v841, %v837
    %v843 = vmul.f32 1.0, %v842
    %v844 = vrcp.pop %v784
    %v845 = vmul.f32 %v784, %v844
    %v846 = vsub.f32 1.0, %v845
    %v847 = vmul.f32 %v844, %v846
    %v848 = vadd.f32 %v844, %v847
    %vm849 = vweird.f32 %v784
    %vm850 = vweird.f32 %v844
    %vm851 = vmor %vm849, %vm850
    %v852 = vsel %vm851, %v844, %v848
    %v853 = vand.u32 2147483647, %v784
    %vm854 = vcmp.eq.f32.partialorder %v853, 8.507059e+37
    %v855 = vand.u32 %v784, 2147483648
    %v856 = vor.u32 1.1754944e-38, %v855
    %v857 = vsel %vm854, %v856, %v852
    %v858 = vmul.f32 1.0, %v857
    %v859 = vrcp.pop %v785
    %v860 = vmul.f32 %v785, %v859
    %v861 = vsub.f32 1.0, %v860
    %v862 = vmul.f32 %v859, %v861
    %v863 = vadd.f32 %v859, %v862
    %vm864 = vweird.f32 %v785
    %vm865 = vweird.f32 %v859
    %vm866 = vmor %vm864, %vm865
    %v867 = vsel %vm866, %v859, %v863
    %v868 = vand.u32 2147483647, %v785
    %vm869 = vcmp.eq.f32.partialorder %v868, 8.507059e+37
    %v870 = vand.u32 %v785, 2147483648
    %v871 = vor.u32 1.1754944e-38, %v870
    %v872 = vsel %vm869, %v871, %v867
    %v873 = vmul.f32 1.0, %v872
    %v874 = vrcp.pop %v786
    %v875 = vmul.f32 %v786, %v874
    %v876 = vsub.f32 1.0, %v875
    %v877 = vmul.f32 %v874, %v876
    %v878 = vadd.f32 %v874, %v877
    %vm879 = vweird.f32 %v786
    %vm880 = vweird.f32 %v874
    %vm881 = vmor %vm879, %vm880
    %v882 = vsel %vm881, %v874, %v878
    %v883 = vand.u32 2147483647, %v786
    %vm884 = vcmp.eq.f32.partialorder %v883, 8.507059e+37
    %v885 = vand.u32 %v786, 2147483648
    %v886 = vor.u32 1.1754944e-38, %v885
    %v887 = vsel %vm884, %v886, %v882
    %v888 = vmul.f32 1.0, %v887
    %v889 = vrcp.pop %v787
    %v890 = vmul.f32 %v787, %v889
    %v891 = vsub.f32 1.0, %v890
    %v892 = vmul.f32 %v889, %v891
    %v893 = vadd.f32 %v889, %v892
    %vm894 = vweird.f32 %v787
    %vm895 = vweird.f32 %v889
    %vm896 = vmor %vm894, %vm895
    %v897 = vsel %vm896, %v889, %v893
    %v898 = vand.u32 2147483647, %v787
    %vm899 = vcmp.eq.f32.partialorder %v898, 8.507059e+37
    %v900 = vand.u32 %v787, 2147483648
    %v901 = vor.u32 1.1754944e-38, %v900
    %v902 = vsel %vm899, %v901, %v897
    %v903 = vmul.f32 1.0, %v902
    %v904 = vrcp.pop %v788
    %v905 = vmul.f32 %v788, %v904
    %v906 = vsub.f32 1.0, %v905
    %v907 = vmul.f32 %v904, %v906
    %v908 = vadd.f32 %v904, %v907
    %vm909 = vweird.f32 %v788
    %vm910 = vweird.f32 %v904
    %vm911 = vmor %vm909, %vm910
    %v912 = vsel %vm911, %v904, %v908
    %v913 = vand.u32 2147483647, %v788
    %vm914 = vcmp.eq.f32.partialorder %v913, 8.507059e+37
    %v915 = vand.u32 %v788, 2147483648
    %v916 = vor.u32 1.1754944e-38, %v915
    %v917 = vsel %vm914, %v916, %v912
    %v918 = vmul.f32 1.0, %v917
    %v919 = vrcp.pop %v789
    %v920 = vmul.f32 %v789, %v919
    %v921 = vsub.f32 1.0, %v920
    %v922 = vmul.f32 %v919, %v921
    %v923 = vadd.f32 %v919, %v922
    %vm924 = vweird.f32 %v789
    %vm925 = vweird.f32 %v919
    %vm926 = vmor %vm924, %vm925
    %v927 = vsel %vm926, %v919, %v923
    %v928 = vand.u32 2147483647, %v789
    %vm929 = vcmp.eq.f32.partialorder %v928, 8.507059e+37
    %v930 = vand.u32 %v789, 2147483648
    %v931 = vor.u32 1.1754944e-38, %v930
    %v932 = vsel %vm929, %v931, %v927
    %v933 = vmul.f32 1.0, %v932
    %v934 = vrcp.pop %v790
    %v935 = vmul.f32 %v790, %v934
    %v936 = vsub.f32 1.0, %v935
    %v937 = vmul.f32 %v934, %v936
    %v938 = vadd.f32 %v934, %v937
    %vm939 = vweird.f32 %v790
    %vm940 = vweird.f32 %v934
    %vm941 = vmor %vm939, %vm940
    %v942 = vsel %vm941, %v934, %v938
    %v943 = vand.u32 2147483647, %v790
    %vm944 = vcmp.eq.f32.partialorder %v943, 8.507059e+37
    %v945 = vand.u32 %v790, 2147483648
    %v946 = vor.u32 1.1754944e-38, %v945
    %v947 = vsel %vm944, %v946, %v942
    %v948 = vmul.f32 1.0, %v947
    %v949 = vrcp.pop %v791
    %v950 = vmul.f32 %v791, %v949
    %v951 = vsub.f32 1.0, %v950
    %v952 = vmul.f32 %v949, %v951
    %v953 = vadd.f32 %v949, %v952
    %vm954 = vweird.f32 %v791
    %vm955 = vweird.f32 %v949
    %vm956 = vmor %vm954, %vm955
    %v957 = vsel %vm956, %v949, %v953
    %v958 = vand.u32 2147483647, %v791
    %vm959 = vcmp.eq.f32.partialorder %v958, 8.507059e+37
    %v960 = vand.u32 %v791, 2147483648
    %v961 = vor.u32 1.1754944e-38, %v960
    %v962 = vsel %vm959, %v961, %v957
    %v963 = vmul.f32 1.0, %v962
    %v964 = vrcp.pop %v792
    %v965 = vmul.f32 %v792, %v964
    %v966 = vsub.f32 1.0, %v965
    %v967 = vmul.f32 %v964, %v966
    %v968 = vadd.f32 %v964, %v967
    %vm969 = vweird.f32 %v792
    %vm970 = vweird.f32 %v964
    %vm971 = vmor %vm969, %vm970
    %v972 = vsel %vm971, %v964, %v968
    %v973 = vand.u32 2147483647, %v792
    %vm974 = vcmp.eq.f32.partialorder %v973, 8.507059e+37
    %v975 = vand.u32 %v792, 2147483648
    %v976 = vor.u32 1.1754944e-38, %v975
    %v977 = vsel %vm974, %v976, %v972
    %v978 = vmul.f32 1.0, %v977
    %v979 = vrcp.pop %v793
    %v980 = vmul.f32 %v793, %v979
    %v981 = vsub.f32 1.0, %v980
    %v982 = vmul.f32 %v979, %v981
    %v983 = vadd.f32 %v979, %v982
    %vm984 = vweird.f32 %v793
    %vm985 = vweird.f32 %v979
    %vm986 = vmor %vm984, %vm985
    %v987 = vsel %vm986, %v979, %v983
    %v988 = vand.u32 2147483647, %v793
    %vm989 = vcmp.eq.f32.partialorder %v988, 8.507059e+37
    %v990 = vand.u32 %v793, 2147483648
    %v991 = vor.u32 1.1754944e-38, %v990
    %v992 = vsel %vm989, %v991, %v987
    %v993 = vmul.f32 1.0, %v992
    %v994 = vrcp.pop %v794
    %v995 = vmul.f32 %v794, %v994
    %v996 = vsub.f32 1.0, %v995
    %v997 = vmul.f32 %v994, %v996
    %v998 = vadd.f32 %v994, %v997
    %vm999 = vweird.f32 %v794
    %vm1000 = vweird.f32 %v994
    %vm1001 = vmor %vm999, %vm1000
    %v1002 = vsel %vm1001, %v994, %v998
    %v1003 = vand.u32 2147483647, %v794
    %vm1004 = vcmp.eq.f32.partialorder %v1003, 8.507059e+37
    %v1005 = vand.u32 %v794, 2147483648
    %v1006 = vor.u32 1.1754944e-38, %v1005
    %v1007 = vsel %vm1004, %v1006, %v1002
    %v1008 = vmul.f32 1.0, %v1007
    %v1009 = vrcp.pop %v795
    %v1010 = vmul.f32 %v795, %v1009
    %v1011 = vsub.f32 1.0, %v1010
    %v1012 = vmul.f32 %v1009, %v1011
    %v1013 = vadd.f32 %v1009, %v1012
    %vm1014 = vweird.f32 %v795
    %vm1015 = vweird.f32 %v1009
    %vm1016 = vmor %vm1014, %vm1015
    %v1017 = vsel %vm1016, %v1009, %v1013
    %v1018 = vand.u32 2147483647, %v795
    %vm1019 = vcmp.eq.f32.partialorder %v1018, 8.507059e+37
    %v1020 = vand.u32 %v795, 2147483648
    %v1021 = vor.u32 1.1754944e-38, %v1020
    %v1022 = vsel %vm1019, %v1021, %v1017
    %v1023 = vmul.f32 1.0, %v1022
    %v1024 = vrcp.pop %v796
    %v1025 = vmul.f32 %v796, %v1024
    %v1026 = vsub.f32 1.0, %v1025
    %v1027 = vmul.f32 %v1024, %v1026
    %v1028 = vadd.f32 %v1024, %v1027
    %vm1029 = vweird.f32 %v796
    %vm1030 = vweird.f32 %v1024
    %vm1031 = vmor %vm1029, %vm1030
    %v1032 = vsel %vm1031, %v1024, %v1028
    %v1033 = vand.u32 2147483647, %v796
    %vm1034 = vcmp.eq.f32.partialorder %v1033, 8.507059e+37
    %v1035 = vand.u32 %v796, 2147483648
    %v1036 = vor.u32 1.1754944e-38, %v1035
    %v1037 = vsel %vm1034, %v1036, %v1032
    %v1038 = vmul.f32 1.0, %v1037
    %v1039 = vrcp.pop %v797
    %v1040 = vmul.f32 %v797, %v1039
    %v1041 = vsub.f32 1.0, %v1040
    %v1042 = vmul.f32 %v1039, %v1041
    %v1043 = vadd.f32 %v1039, %v1042
    %vm1044 = vweird.f32 %v797
    %vm1045 = vweird.f32 %v1039
    %vm1046 = vmor %vm1044, %vm1045
    %v1047 = vsel %vm1046, %v1039, %v1043
    %v1048 = vand.u32 2147483647, %v797
    %vm1049 = vcmp.eq.f32.partialorder %v1048, 8.507059e+37
    %v1050 = vand.u32 %v797, 2147483648
    %v1051 = vor.u32 1.1754944e-38, %v1050
    %v1052 = vsel %vm1049, %v1051, %v1047
    %v1053 = vmul.f32 1.0, %v1052
    %v1054 = vrcp.pop %v798
    %v1055 = vmul.f32 %v798, %v1054
    %v1056 = vsub.f32 1.0, %v1055
    %v1057 = vmul.f32 %v1054, %v1056
    %v1058 = vadd.f32 %v1054, %v1057
    %vm1059 = vweird.f32 %v798
    %vm1060 = vweird.f32 %v1054
    %vm1061 = vmor %vm1059, %vm1060
    %v1062 = vsel %vm1061, %v1054, %v1058
    %v1063 = vand.u32 2147483647, %v798
    %vm1064 = vcmp.eq.f32.partialorder %v1063, 8.507059e+37
    %v1065 = vand.u32 %v798, 2147483648
    %v1066 = vor.u32 1.1754944e-38, %v1065
    %v1067 = vsel %vm1064, %v1066, %v1062
    %v1068 = vmul.f32 1.0, %v1067
    %v1069 = vrcp.pop %v799
    %v1070 = vmul.f32 %v799, %v1069
    %v1071 = vsub.f32 1.0, %v1070
    %v1072 = vmul.f32 %v1069, %v1071
    %v1073 = vadd.f32 %v1069, %v1072
    %vm1074 = vweird.f32 %v799
    %vm1075 = vweird.f32 %v1069
    %vm1076 = vmor %vm1074, %vm1075
    %v1077 = vsel %vm1076, %v1069, %v1073
    %v1078 = vand.u32 2147483647, %v799
    %vm1079 = vcmp.eq.f32.partialorder %v1078, 8.507059e+37
    %v1080 = vand.u32 %v799, 2147483648
    %v1081 = vor.u32 1.1754944e-38, %v1080
    %v1082 = vsel %vm1079, %v1081, %v1077
    %v1083 = vmul.f32 1.0, %v1082
    %v1084 = vrcp.pop %v800
    %v1085 = vmul.f32 %v800, %v1084
    %v1086 = vsub.f32 1.0, %v1085
    %v1087 = vmul.f32 %v1084, %v1086
    %v1088 = vadd.f32 %v1084, %v1087
    %vm1089 = vweird.f32 %v800
    %vm1090 = vweird.f32 %v1084
    %vm1091 = vmor %vm1089, %vm1090
    %v1092 = vsel %vm1091, %v1084, %v1088
    %v1093 = vand.u32 2147483647, %v800
    %vm1094 = vcmp.eq.f32.partialorder %v1093, 8.507059e+37
    %v1095 = vand.u32 %v800, 2147483648
    %v1096 = vor.u32 1.1754944e-38, %v1095
    %v1097 = vsel %vm1094, %v1096, %v1092
    %v1098 = vmul.f32 1.0, %v1097
    %v1099 = vrcp.pop %v801
    %v1100 = vmul.f32 %v801, %v1099
    %v1101 = vsub.f32 1.0, %v1100
    %v1102 = vmul.f32 %v1099, %v1101
    %v1103 = vadd.f32 %v1099, %v1102
    %vm1104 = vweird.f32 %v801
    %vm1105 = vweird.f32 %v1099
    %vm1106 = vmor %vm1104, %vm1105
    %v1107 = vsel %vm1106, %v1099, %v1103
    %v1108 = vand.u32 2147483647, %v801
    %vm1109 = vcmp.eq.f32.partialorder %v1108, 8.507059e+37
    %v1110 = vand.u32 %v801, 2147483648
    %v1111 = vor.u32 1.1754944e-38, %v1110
    %v1112 = vsel %vm1109, %v1111, %v1107
    %v1113 = vmul.f32 1.0, %v1112
    %v1114 = vrcp.pop %v802
    %v1115 = vmul.f32 %v802, %v1114
    %v1116 = vsub.f32 1.0, %v1115
    %v1117 = vmul.f32 %v1114, %v1116
    %v1118 = vadd.f32 %v1114, %v1117
    %vm1119 = vweird.f32 %v802
    %vm1120 = vweird.f32 %v1114
    %vm1121 = vmor %vm1119, %vm1120
    %v1122 = vsel %vm1121, %v1114, %v1118
    %v1123 = vand.u32 2147483647, %v802
    %vm1124 = vcmp.eq.f32.partialorder %v1123, 8.507059e+37
    %v1125 = vand.u32 %v802, 2147483648
    %v1126 = vor.u32 1.1754944e-38, %v1125
    %v1127 = vsel %vm1124, %v1126, %v1122
    %v1128 = vmul.f32 1.0, %v1127
    %v1129 = vrcp.pop %v803
    %v1130 = vmul.f32 %v803, %v1129
    %v1131 = vsub.f32 1.0, %v1130
    %v1132 = vmul.f32 %v1129, %v1131
    %v1133 = vadd.f32 %v1129, %v1132
    %vm1134 = vweird.f32 %v803
    %vm1135 = vweird.f32 %v1129
    %vm1136 = vmor %vm1134, %vm1135
    %v1137 = vsel %vm1136, %v1129, %v1133
    %v1138 = vand.u32 2147483647, %v803
    %vm1139 = vcmp.eq.f32.partialorder %v1138, 8.507059e+37
    %v1140 = vand.u32 %v803, 2147483648
    %v1141 = vor.u32 1.1754944e-38, %v1140
    %v1142 = vsel %vm1139, %v1141, %v1137
    %v1143 = vmul.f32 1.0, %v1142
    %v1144 = vrcp.pop %v804
    %v1145 = vmul.f32 %v804, %v1144
    %v1146 = vsub.f32 1.0, %v1145
    %v1147 = vmul.f32 %v1144, %v1146
    %v1148 = vadd.f32 %v1144, %v1147
    %vm1149 = vweird.f32 %v804
    %vm1150 = vweird.f32 %v1144
    %vm1151 = vmor %vm1149, %vm1150
    %v1152 = vsel %vm1151, %v1144, %v1148
    %v1153 = vand.u32 2147483647, %v804
    %vm1154 = vcmp.eq.f32.partialorder %v1153, 8.507059e+37
    %v1155 = vand.u32 %v804, 2147483648
    %v1156 = vor.u32 1.1754944e-38, %v1155
    %v1157 = vsel %vm1154, %v1156, %v1152
    %v1158 = vmul.f32 1.0, %v1157
    %v1159 = vrcp.pop %v805
    %v1160 = vmul.f32 %v805, %v1159
    %v1161 = vsub.f32 1.0, %v1160
    %v1162 = vmul.f32 %v1159, %v1161
    %v1163 = vadd.f32 %v1159, %v1162
    %vm1164 = vweird.f32 %v805
    %vm1165 = vweird.f32 %v1159
    %vm1166 = vmor %vm1164, %vm1165
    %v1167 = vsel %vm1166, %v1159, %v1163
    %v1168 = vand.u32 2147483647, %v805
    %vm1169 = vcmp.eq.f32.partialorder %v1168, 8.507059e+37
    %v1170 = vand.u32 %v805, 2147483648
    %v1171 = vor.u32 1.1754944e-38, %v1170
    %v1172 = vsel %vm1169, %v1171, %v1167
    %v1173 = vmul.f32 1.0, %v1172
    %v1174 = vrcp.pop %v806
    %v1175 = vmul.f32 %v806, %v1174
    %v1176 = vsub.f32 1.0, %v1175
    %v1177 = vmul.f32 %v1174, %v1176
    %v1178 = vadd.f32 %v1174, %v1177
    %vm1179 = vweird.f32 %v806
    %vm1180 = vweird.f32 %v1174
    %vm1181 = vmor %vm1179, %vm1180
    %v1182 = vsel %vm1181, %v1174, %v1178
    %v1183 = vand.u32 2147483647, %v806
    %vm1184 = vcmp.eq.f32.partialorder %v1183, 8.507059e+37
    %v1185 = vand.u32 %v806, 2147483648
    %v1186 = vor.u32 1.1754944e-38, %v1185
    %v1187 = vsel %vm1184, %v1186, %v1182
    %v1188 = vmul.f32 1.0, %v1187
    %v1189 = vrcp.pop %v807
    %v1190 = vmul.f32 %v807, %v1189
    %v1191 = vsub.f32 1.0, %v1190
    %v1192 = vmul.f32 %v1189, %v1191
    %v1193 = vadd.f32 %v1189, %v1192
    %vm1194 = vweird.f32 %v807
    %vm1195 = vweird.f32 %v1189
    %vm1196 = vmor %vm1194, %vm1195
    %v1197 = vsel %vm1196, %v1189, %v1193
    %v1198 = vand.u32 2147483647, %v807
    %vm1199 = vcmp.eq.f32.partialorder %v1198, 8.507059e+37
    %v1200 = vand.u32 %v807, 2147483648
    %v1201 = vor.u32 1.1754944e-38, %v1200
    %v1202 = vsel %vm1199, %v1201, %v1197
    %v1203 = vmul.f32 1.0, %v1202
    %v1204 = vrcp.pop %v808
    %v1205 = vmul.f32 %v808, %v1204
    %v1206 = vsub.f32 1.0, %v1205
    %v1207 = vmul.f32 %v1204, %v1206
    %v1208 = vadd.f32 %v1204, %v1207
    %vm1209 = vweird.f32 %v808
    %vm1210 = vweird.f32 %v1204
    %vm1211 = vmor %vm1209, %vm1210
    %v1212 = vsel %vm1211, %v1204, %v1208
    %v1213 = vand.u32 2147483647, %v808
    %vm1214 = vcmp.eq.f32.partialorder %v1213, 8.507059e+37
    %v1215 = vand.u32 %v808, 2147483648
    %v1216 = vor.u32 1.1754944e-38, %v1215
    %v1217 = vsel %vm1214, %v1216, %v1212
    %v1218 = vmul.f32 1.0, %v1217
    %v1219 = vrcp.pop %v809
    %v1220 = vmul.f32 %v809, %v1219
    %v1221 = vsub.f32 1.0, %v1220
    %v1222 = vmul.f32 %v1219, %v1221
    %v1223 = vadd.f32 %v1219, %v1222
    %vm1224 = vweird.f32 %v809
    %vm1225 = vweird.f32 %v1219
    %vm1226 = vmor %vm1224, %vm1225
    %v1227 = vsel %vm1226, %v1219, %v1223
    %v1228 = vand.u32 2147483647, %v809
    %vm1229 = vcmp.eq.f32.partialorder %v1228, 8.507059e+37
    %v1230 = vand.u32 %v809, 2147483648
    %v1231 = vor.u32 1.1754944e-38, %v1230
    %v1232 = vsel %vm1229, %v1231, %v1227
    %v1233 = vmul.f32 1.0, %v1232
    %v1234 = vrcp.pop %v810
    %v1235 = vmul.f32 %v810, %v1234
    %v1236 = vsub.f32 1.0, %v1235
    %v1237 = vmul.f32 %v1234, %v1236
    %v1238 = vadd.f32 %v1234, %v1237
    %vm1239 = vweird.f32 %v810
    %vm1240 = vweird.f32 %v1234
    %vm1241 = vmor %vm1239, %vm1240
    %v1242 = vsel %vm1241, %v1234, %v1238
    %v1243 = vand.u32 2147483647, %v810
    %vm1244 = vcmp.eq.f32.partialorder %v1243, 8.507059e+37
    %v1245 = vand.u32 %v810, 2147483648
    %v1246 = vor.u32 1.1754944e-38, %v1245
    %v1247 = vsel %vm1244, %v1246, %v1242
    %v1248 = vmul.f32 1.0, %v1247
    %v1249 = vrcp.pop %v811
    %v1250 = vmul.f32 %v811, %v1249
    %v1251 = vsub.f32 1.0, %v1250
    %v1252 = vmul.f32 %v1249, %v1251
    %v1253 = vadd.f32 %v1249, %v1252
    %vm1254 = vweird.f32 %v811
    %vm1255 = vweird.f32 %v1249
    %vm1256 = vmor %vm1254, %vm1255
    %v1257 = vsel %vm1256, %v1249, %v1253
    %v1258 = vand.u32 2147483647, %v811
    %vm1259 = vcmp.eq.f32.partialorder %v1258, 8.507059e+37
    %v1260 = vand.u32 %v811, 2147483648
    %v1261 = vor.u32 1.1754944e-38, %v1260
    %v1262 = vsel %vm1259, %v1261, %v1257
    %v1263 = vmul.f32 1.0, %v1262
    %v1264 = vrcp.pop %v812
    %v1265 = vmul.f32 %v812, %v1264
    %v1266 = vsub.f32 1.0, %v1265
    %v1267 = vmul.f32 %v1264, %v1266
    %v1268 = vadd.f32 %v1264, %v1267
    %vm1269 = vweird.f32 %v812
    %vm1270 = vweird.f32 %v1264
    %vm1271 = vmor %vm1269, %vm1270
    %v1272 = vsel %vm1271, %v1264, %v1268
    %v1273 = vand.u32 2147483647, %v812
    %vm1274 = vcmp.eq.f32.partialorder %v1273, 8.507059e+37
    %v1275 = vand.u32 %v812, 2147483648
    %v1276 = vor.u32 1.1754944e-38, %v1275
    %v1277 = vsel %vm1274, %v1276, %v1272
    %v1278 = vmul.f32 1.0, %v1277
    %v1279 = vrcp.pop %v813
    %v1280 = vmul.f32 %v813, %v1279
    %v1281 = vsub.f32 1.0, %v1280
    %v1282 = vmul.f32 %v1279, %v1281
    %v1283 = vadd.f32 %v1279, %v1282
    %vm1284 = vweird.f32 %v813
    %vm1285 = vweird.f32 %v1279
    %vm1286 = vmor %vm1284, %vm1285
    %v1287 = vsel %vm1286, %v1279, %v1283
    %v1288 = vand.u32 2147483647, %v813
    %vm1289 = vcmp.eq.f32.partialorder %v1288, 8.507059e+37
    %v1290 = vand.u32 %v813, 2147483648
    %v1291 = vor.u32 1.1754944e-38, %v1290
    %v1292 = vsel %vm1289, %v1291, %v1287
    %v1293 = vmul.f32 1.0, %v1292
    %v1294 = vmul.f32 %v336, 1.442695
    %v1295 = vpow.pop %v1294
    %v1296 = vmul.f32 %v359, 1.442695
    %v1297 = vpow.pop %v1296
    %v1298 = vmul.f32 %v382, 1.442695
    %v1299 = vpow.pop %v1298
    %v1300 = vmul.f32 %v405, 1.442695
    %v1301 = vpow.pop %v1300
    %v1302 = vmul.f32 %v428, 1.442695
    %v1303 = vpow.pop %v1302
    %v1304 = vmul.f32 %v451, 1.442695
    %v1305 = vpow.pop %v1304
    %v1306 = vmul.f32 %v474, 1.442695
    %v1307 = vpow.pop %v1306
    %v1308 = vmul.f32 %v497, 1.442695
    %v1309 = vpow.pop %v1308
    %v1310 = vmul.f32 %v520, 1.442695
    %v1311 = vpow.pop %v1310
    %v1312 = vmul.f32 %v543, 1.442695
    %v1313 = vpow.pop %v1312
    %v1314 = vmul.f32 %v566, 1.442695
    %v1315 = vpow.pop %v1314
    %v1316 = vmul.f32 %v589, 1.442695
    %v1317 = vpow.pop %v1316
    %v1318 = vmul.f32 %v612, 1.442695
    %v1319 = vpow.pop %v1318
    %v1320 = vmul.f32 %v635, 1.442695
    %v1321 = vpow.pop %v1320
    %v1322 = vmul.f32 %v658, 1.442695
    %v1323 = vpow.pop %v1322
    %v1324 = vmul.f32 %v681, 1.442695
    %v1325 = vpow.pop %v1324
    %v1326 = vmax.f32 %v1295, 0.0
    %v1327 = vmax.f32 %v1297, 0.0
    %v1328 = vmax.f32 %v1299, 0.0
    %v1329 = vmax.f32 %v1301, 0.0
    %v1330 = vmax.f32 %v1303, 0.0
    %v1331 = vmax.f32 %v1305, 0.0
    %v1332 = vmax.f32 %v1307, 0.0
    %v1333 = vmax.f32 %v1309, 0.0
    %v1334 = vmax.f32 %v1311, 0.0
    %v1335 = vmax.f32 %v1313, 0.0
    %v1336 = vmax.f32 %v1315, 0.0
    %v1337 = vmax.f32 %v1317, 0.0
    %v1338 = vmax.f32 %v1319, 0.0
    %v1339 = vmax.f32 %v1321, 0.0
    %v1340 = vmax.f32 %v1323, 0.0
    %v1341 = vmax.f32 %v1325, 0.0
    %v1342 = vmin.f32 %v1326, 0.2
    %v1343 = vmin.f32 %v1327, 0.2
    %v1344 = vmin.f32 %v1328, 0.2
    %v1345 = vmin.f32 %v1329, 0.2
    %v1346 = vmin.f32 %v1330, 0.2
    %v1347 = vmin.f32 %v1331, 0.2
    %v1348 = vmin.f32 %v1332, 0.2
    %v1349 = vmin.f32 %v1333, 0.2
    %v1350 = vmin.f32 %v1334, 0.2
    %v1351 = vmin.f32 %v1335, 0.2
    %v1352 = vmin.f32 %v1336, 0.2
    %v1353 = vmin.f32 %v1337, 0.2
    %v1354 = vmin.f32 %v1338, 0.2
    %v1355 = vmin.f32 %v1339, 0.2
    %v1356 = vmin.f32 %v1340, 0.2
    %v1357 = vmin.f32 %v1341, 0.2
    %v1358 = vsub.f32 %v828, 0.5
    %v1359 = vsub.f32 %v843, 0.5
    %v1360 = vsub.f32 %v858, 0.5
    %v1361 = vsub.f32 %v873, 0.5
    %v1362 = vsub.f32 %v888, 0.5
    %v1363 = vsub.f32 %v903, 0.5
    %v1364 = vsub.f32 %v918, 0.5
    %v1365 = vsub.f32 %v933, 0.5
    %v1366 = vsub.f32 %v948, 0.5
    %v1367 = vsub.f32 %v963, 0.5
    %v1368 = vsub.f32 %v978, 0.5
    %v1369 = vsub.f32 %v993, 0.5
    %v1370 = vsub.f32 %v1008, 0.5
    %v1371 = vsub.f32 %v1023, 0.5
    %v1372 = vsub.f32 %v1038, 0.5
    %v1373 = vsub.f32 %v1053, 0.5
    %v1374 = vsub.f32 %v1068, 0.5
    %v1375 = vsub.f32 %v1083, 0.5
    %v1376 = vsub.f32 %v1098, 0.5
    %v1377 = vsub.f32 %v1113, 0.5
    %v1378 = vsub.f32 %v1128, 0.5
    %v1379 = vsub.f32 %v1143, 0.5
    %v1380 = vsub.f32 %v1158, 0.5
    %v1381 = vsub.f32 %v1173, 0.5
    %v1382 = vsub.f32 %v1188, 0.5
    %v1383 = vsub.f32 %v1203, 0.5
    %v1384 = vsub.f32 %v1218, 0.5
    %v1385 = vsub.f32 %v1233, 0.5
    %v1386 = vsub.f32 %v1248, 0.5
    %v1387 = vsub.f32 %v1263, 0.5
    %v1388 = vsub.f32 %v1278, 0.5
    %v1389 = vsub.f32 %v1293, 0.5
    %v1390 = vmul.f32 %v1358, 0.0375
    %v1391 = vmul.f32 %v1359, 0.0375
    %v1392 = vmul.f32 %v1360, 0.0375
    %v1393 = vmul.f32 %v1361, 0.0375
    %v1394 = vmul.f32 %v1362, 0.0375
    %v1395 = vmul.f32 %v1363, 0.0375
    %v1396 = vmul.f32 %v1364, 0.0375
    %v1397 = vmul.f32 %v1365, 0.0375
    %v1398 = vmul.f32 %v1366, 0.0375
    %v1399 = vmul.f32 %v1367, 0.0375
    %v1400 = vmul.f32 %v1368, 0.0375
    %v1401 = vmul.f32 %v1369, 0.0375
    %v1402 = vmul.f32 %v1370, 0.0375
    %v1403 = vmul.f32 %v1371, 0.0375
    %v1404 = vmul.f32 %v1372, 0.0375
    %v1405 = vmul.f32 %v1373, 0.0375
    %v1406 = vmul.f32 %v1374, 0.0375
    %v1407 = vmul.f32 %v1375, 0.0375
    %v1408 = vmul.f32 %v1376, 0.0375
    %v1409 = vmul.f32 %v1377, 0.0375
    %v1410 = vmul.f32 %v1378, 0.0375
    %v1411 = vmul.f32 %v1379, 0.0375
    %v1412 = vmul.f32 %v1380, 0.0375
    %v1413 = vmul.f32 %v1381, 0.0375
    %v1414 = vmul.f32 %v1382, 0.0375
    %v1415 = vmul.f32 %v1383, 0.0375
    %v1416 = vmul.f32 %v1384, 0.0375
    %v1417 = vmul.f32 %v1385, 0.0375
    %v1418 = vmul.f32 %v1386, 0.0375
    %v1419 = vmul.f32 %v1387, 0.0375
    %v1420 = vmul.f32 %v1388, 0.0375
    %v1421 = vmul.f32 %v1389, 0.0375
    %v1422 = vld [vmem:[#allocation5] sm:$0x77]
    %v1423 = vld [vmem:[#allocation5 + $0x8] sm:$0x77]
    %v1424 = vld [vmem:[#allocation5 + $0x10] sm:$0x77]
    %v1425 = vld [vmem:[#allocation5 + $0x18] sm:$0x77]
    %v1426 = vld [vmem:[#allocation5 + $0x20] sm:$0x77]
    %v1427 = vld [vmem:[#allocation5 + $0x28] sm:$0x77]
    %v1428 = vld [vmem:[#allocation5 + $0x30] sm:$0x77]
    %v1429 = vld [vmem:[#allocation5 + $0x38] sm:$0x77]
    %1462 = vst.sshfl [vmem:[#allocation1] sm:$0xff pattern:$0x75316420] %v1390
    %1463 = vst.sshfl [vmem:[#allocation1 + $0x8] sm:$0xff pattern:$0x75316420] %v1391
    %1464 = vst.sshfl [vmem:[#allocation1 + $0x10] sm:$0xff pattern:$0x75316420] %v1392
    %1465 = vst.sshfl [vmem:[#allocation1 + $0x18] sm:$0xff pattern:$0x75316420] %v1393
    %1466 = vst.sshfl [vmem:[#allocation1 + $0x20] sm:$0xff pattern:$0x75316420] %v1394
    %1467 = vst.sshfl [vmem:[#allocation1 + $0x28] sm:$0xff pattern:$0x75316420] %v1395
    %1468 = vst.sshfl [vmem:[#allocation1 + $0x30] sm:$0xff pattern:$0x75316420] %v1396
    %1469 = vst.sshfl [vmem:[#allocation1 + $0x38] sm:$0xff pattern:$0x75316420] %v1397
    %s1470 = scalar_lea.vmem [#allocation1], 1
    %v1471 = vld [vmem:[%s1470] ss:$2 sm:$0xff]
    %s1472 = scalar_lea.vmem [#allocation1], 17
    %v1473 = vld [vmem:[%s1472] ss:$2 sm:$0xff]
    %s1474 = scalar_lea.vmem [#allocation1], 33
    %v1475 = vld [vmem:[%s1474] ss:$2 sm:$0xff]
    %s1476 = scalar_lea.vmem [#allocation1], 49
    %v1477 = vld [vmem:[%s1476] ss:$2 sm:$0xff]
    %1478 = vst.sshfl [vmem:[#allocation1] sm:$0xff pattern:$0x75316420] %v1398
    %1479 = vst.sshfl [vmem:[#allocation1 + $0x8] sm:$0xff pattern:$0x75316420] %v1399
    %1480 = vst.sshfl [vmem:[#allocation1 + $0x10] sm:$0xff pattern:$0x75316420] %v1400
    %1481 = vst.sshfl [vmem:[#allocation1 + $0x18] sm:$0xff pattern:$0x75316420] %v1401
    %1482 = vst.sshfl [vmem:[#allocation1 + $0x20] sm:$0xff pattern:$0x75316420] %v1402
    %1483 = vst.sshfl [vmem:[#allocation1 + $0x28] sm:$0xff pattern:$0x75316420] %v1403
    %1484 = vst.sshfl [vmem:[#allocation1 + $0x30] sm:$0xff pattern:$0x75316420] %v1404
    %1485 = vst.sshfl [vmem:[#allocation1 + $0x38] sm:$0xff pattern:$0x75316420] %v1405
    %v1486 = vld [vmem:[%s1470] ss:$2 sm:$0xff]
    %v1487 = vld [vmem:[%s1472] ss:$2 sm:$0xff]
    %v1488 = vld [vmem:[%s1474] ss:$2 sm:$0xff]
    %v1489 = vld [vmem:[%s1476] ss:$2 sm:$0xff]
    %1490 = vst.sshfl [vmem:[#allocation1] sm:$0xff pattern:$0x75316420] %v1406
    %1491 = vst.sshfl [vmem:[#allocation1 + $0x8] sm:$0xff pattern:$0x75316420] %v1407
    %1492 = vst.sshfl [vmem:[#allocation1 + $0x10] sm:$0xff pattern:$0x75316420] %v1408
    %1493 = vst.sshfl [vmem:[#allocation1 + $0x18] sm:$0xff pattern:$0x75316420] %v1409
    %1494 = vst.sshfl [vmem:[#allocation1 + $0x20] sm:$0xff pattern:$0x75316420] %v1410
    %1495 = vst.sshfl [vmem:[#allocation1 + $0x28] sm:$0xff pattern:$0x75316420] %v1411
    %1496 = vst.sshfl [vmem:[#allocation1 + $0x30] sm:$0xff pattern:$0x75316420] %v1412
    %1497 = vst.sshfl [vmem:[#allocation1 + $0x38] sm:$0xff pattern:$0x75316420] %v1413
    %v1498 = vld [vmem:[#allocation1] ss:$2 sm:$0xff]
    %s1499 = scalar_lea.vmem [#allocation1], 16
    %v1500 = vld [vmem:[%s1499] ss:$2 sm:$0xff]
    %s1501 = scalar_lea.vmem [#allocation1], 32
    %v1502 = vld [vmem:[%s1501] ss:$2 sm:$0xff]
    %s1503 = scalar_lea.vmem [#allocation1], 48
    %v1504 = vld [vmem:[%s1503] ss:$2 sm:$0xff]
    %1505 = vst.sshfl [vmem:[#allocation1] sm:$0xff pattern:$0x75316420] %v1414
    %1506 = vst.sshfl [vmem:[#allocation1 + $0x8] sm:$0xff pattern:$0x75316420] %v1415
    %1507 = vst.sshfl [vmem:[#allocation1 + $0x10] sm:$0xff pattern:$0x75316420] %v1416
    %1508 = vst.sshfl [vmem:[#allocation1 + $0x18] sm:$0xff pattern:$0x75316420] %v1417
    %1509 = vst.sshfl [vmem:[#allocation1 + $0x20] sm:$0xff pattern:$0x75316420] %v1418
    %1510 = vst.sshfl [vmem:[#allocation1 + $0x28] sm:$0xff pattern:$0x75316420] %v1419
    %1511 = vst.sshfl [vmem:[#allocation1 + $0x30] sm:$0xff pattern:$0x75316420] %v1420
    %1512 = vst.sshfl [vmem:[#allocation1 + $0x38] sm:$0xff pattern:$0x75316420] %v1421
    %v1513 = vld [vmem:[#allocation1] ss:$2 sm:$0xff]
    %v1514 = vld [vmem:[%s1499] ss:$2 sm:$0xff]
    %v1515 = vld [vmem:[%s1501] ss:$2 sm:$0xff]
    %v1516 = vld [vmem:[%s1503] ss:$2 sm:$0xff]
    %vm1517 = vcmask 1041408
    %vm1518 = vcmask 1045508
    %vm1519 = vmor %vm1517, %vm1518
    %v1520 = vrot.slane %v1471, 6
    %v1521 = vrot.slane %v1520, 4
    %v1522 = vrot.slane %v1498, 6
    %v1523 = vsel %vm1519, %v1521, %v1522
    %v1524 = vrot.slane %v1473, 6
    %v1525 = vrot.slane %v1524, 4
    %v1526 = vrot.slane %v1500, 6
    %v1527 = vsel %vm1519, %v1525, %v1526
    %v1528 = vrot.slane %v1475, 6
    %v1529 = vrot.slane %v1528, 4
    %v1530 = vrot.slane %v1502, 6
    %v1531 = vsel %vm1519, %v1529, %v1530
    %v1532 = vrot.slane %v1477, 6
    %v1533 = vrot.slane %v1532, 4
    %v1534 = vrot.slane %v1504, 6
    %v1535 = vsel %vm1519, %v1533, %v1534
    %v1536 = vrot.slane %v1486, 6
    %v1537 = vrot.slane %v1536, 4
    %v1538 = vrot.slane %v1513, 6
    %v1539 = vsel %vm1519, %v1537, %v1538
    %v1540 = vrot.slane %v1487, 6
    %v1541 = vrot.slane %v1540, 4
    %v1542 = vrot.slane %v1514, 6
    %v1543 = vsel %vm1519, %v1541, %v1542
    %v1544 = vrot.slane %v1488, 6
    %v1545 = vrot.slane %v1544, 4
    %v1546 = vrot.slane %v1515, 6
    %v1547 = vsel %vm1519, %v1545, %v1546
    %v1548 = vrot.slane %v1489, 6
    %v1549 = vrot.slane %v1548, 4
    %v1550 = vrot.slane %v1516, 6
    %v1551 = vsel %vm1519, %v1549, %v1550
    %v1560 = vadd.f32 %v1422, %v1523
    %v1561 = vadd.f32 %v1423, %v1527
    %v1562 = vadd.f32 %v1424, %v1531
    %v1563 = vadd.f32 %v1425, %v1535
    %v1564 = vadd.f32 %v1426, %v1539
    %v1565 = vadd.f32 %v1427, %v1543
    %v1566 = vadd.f32 %v1428, %v1547
    %v1567 = vadd.f32 %v1429, %v1551
    %v1568 = vmul.f32 %v339, %v339
    %v1569 = vmul.f32 %v362, %v362
    %v1570 = vmul.f32 %v385, %v385
    %v1571 = vmul.f32 %v408, %v408
    %v1572 = vmul.f32 %v431, %v431
    %v1573 = vmul.f32 %v454, %v454
    %v1574 = vmul.f32 %v477, %v477
    %v1575 = vmul.f32 %v500, %v500
    %v1576 = vmul.f32 %v523, %v523
    %v1577 = vmul.f32 %v546, %v546
    %v1578 = vmul.f32 %v569, %v569
    %v1579 = vmul.f32 %v592, %v592
    %v1580 = vmul.f32 %v615, %v615
    %v1581 = vmul.f32 %v638, %v638
    %v1582 = vmul.f32 %v661, %v661
    %v1583 = vmul.f32 %v684, %v684
    %v1600 = vrot.slane %v1568, 1
    %v1601 = vrot.slane %v1569, 1
    %v1602 = vrot.slane %v1570, 1
    %v1603 = vrot.slane %v1571, 1
    %v1604 = vrot.slane %v1572, 1
    %v1605 = vrot.slane %v1573, 1
    %v1606 = vrot.slane %v1574, 1
    %v1607 = vrot.slane %v1575, 1
    %v1608 = vrot.slane %v1576, 1
    %v1609 = vrot.slane %v1577, 1
    %v1610 = vrot.slane %v1578, 1
    %v1611 = vrot.slane %v1579, 1
    %v1612 = vrot.slane %v1580, 1
    %v1613 = vrot.slane %v1581, 1
    %v1614 = vrot.slane %v1582, 1
    %v1615 = vrot.slane %v1583, 1
    %v1632 = vadd.f32 %v1568, %v1600
    %v1633 = vadd.f32 %v1569, %v1601
    %v1634 = vadd.f32 %v1570, %v1602
    %v1635 = vadd.f32 %v1571, %v1603
    %v1636 = vadd.f32 %v1572, %v1604
    %v1637 = vadd.f32 %v1573, %v1605
    %v1638 = vadd.f32 %v1574, %v1606
    %v1639 = vadd.f32 %v1575, %v1607
    %v1640 = vadd.f32 %v1576, %v1608
    %v1641 = vadd.f32 %v1577, %v1609
    %v1642 = vadd.f32 %v1578, %v1610
    %v1643 = vadd.f32 %v1579, %v1611
    %v1644 = vadd.f32 %v1580, %v1612
    %v1645 = vadd.f32 %v1581, %v1613
    %v1646 = vadd.f32 %v1582, %v1614
    %v1647 = vadd.f32 %v1583, %v1615
    %v1648 = vrot.slane %v1568, 2
    %v1649 = vrot.slane %v1569, 2
    %v1650 = vrot.slane %v1570, 2
    %v1651 = vrot.slane %v1571, 2
    %v1652 = vrot.slane %v1572, 2
    %v1653 = vrot.slane %v1573, 2
    %v1654 = vrot.slane %v1574, 2
    %v1655 = vrot.slane %v1575, 2
    %v1656 = vrot.slane %v1576, 2
    %v1657 = vrot.slane %v1577, 2
    %v1658 = vrot.slane %v1578, 2
    %v1659 = vrot.slane %v1579, 2
    %v1660 = vrot.slane %v1580, 2
    %v1661 = vrot.slane %v1581, 2
    %v1662 = vrot.slane %v1582, 2
    %v1663 = vrot.slane %v1583, 2
    %v1680 = vadd.f32 %v1632, %v1648
    %v1681 = vadd.f32 %v1633, %v1649
    %v1682 = vadd.f32 %v1634, %v1650
    %v1683 = vadd.f32 %v1635, %v1651
    %v1684 = vadd.f32 %v1636, %v1652
    %v1685 = vadd.f32 %v1637, %v1653
    %v1686 = vadd.f32 %v1638, %v1654
    %v1687 = vadd.f32 %v1639, %v1655
    %v1688 = vadd.f32 %v1640, %v1656
    %v1689 = vadd.f32 %v1641, %v1657
    %v1690 = vadd.f32 %v1642, %v1658
    %v1691 = vadd.f32 %v1643, %v1659
    %v1692 = vadd.f32 %v1644, %v1660
    %v1693 = vadd.f32 %v1645, %v1661
    %v1694 = vadd.f32 %v1646, %v1662
    %v1695 = vadd.f32 %v1647, %v1663
    %v1696 = vrot.slane %v1568, 3
    %v1697 = vrot.slane %v1569, 3
    %v1698 = vrot.slane %v1570, 3
    %v1699 = vrot.slane %v1571, 3
    %v1700 = vrot.slane %v1572, 3
    %v1701 = vrot.slane %v1573, 3
    %v1702 = vrot.slane %v1574, 3
    %v1703 = vrot.slane %v1575, 3
    %v1704 = vrot.slane %v1576, 3
    %v1705 = vrot.slane %v1577, 3
    %v1706 = vrot.slane %v1578, 3
    %v1707 = vrot.slane %v1579, 3
    %v1708 = vrot.slane %v1580, 3
    %v1709 = vrot.slane %v1581, 3
    %v1710 = vrot.slane %v1582, 3
    %v1711 = vrot.slane %v1583, 3
    %v1728 = vadd.f32 %v1680, %v1696
    %v1729 = vadd.f32 %v1681, %v1697
    %v1730 = vadd.f32 %v1682, %v1698
    %v1731 = vadd.f32 %v1683, %v1699
    %v1732 = vadd.f32 %v1684, %v1700
    %v1733 = vadd.f32 %v1685, %v1701
    %v1734 = vadd.f32 %v1686, %v1702
    %v1735 = vadd.f32 %v1687, %v1703
    %v1736 = vadd.f32 %v1688, %v1704
    %v1737 = vadd.f32 %v1689, %v1705
    %v1738 = vadd.f32 %v1690, %v1706
    %v1739 = vadd.f32 %v1691, %v1707
    %v1740 = vadd.f32 %v1692, %v1708
    %v1741 = vadd.f32 %v1693, %v1709
    %v1742 = vadd.f32 %v1694, %v1710
    %v1743 = vadd.f32 %v1695, %v1711
    %v1744 = vrsqrt.pop %v1728
    %v1745 = vmul.f32 %v1744, %v1728
    %v1746 = vmul.f32 %v1745, %v1744
    %v1747 = vmul.f32 0.5, %v1746
    %v1748 = vsub.f32 1.5, %v1747
    %v1749 = vmul.f32 %v1744, %v1748
    %v1750 = vmul.f32 %v1728, %v1749
    %vm1751 = vcmp.eq.f32.partialorder %v1728, inf
    %v1752 = vsel %vm1751, %v1728, %v1750
    %vm1753 = vcmp.eq.f32.partialorder %v1728, 0.0
    %v1754 = vand.u32 %v1728, 2147483648
    %v1755 = vsel %vm1753, %v1754, %v1752
    %v1756 = vrsqrt.pop %v1729
    %v1757 = vmul.f32 %v1756, %v1729
    %v1758 = vmul.f32 %v1757, %v1756
    %v1759 = vmul.f32 0.5, %v1758
    %v1760 = vsub.f32 1.5, %v1759
    %v1761 = vmul.f32 %v1756, %v1760
    %v1762 = vmul.f32 %v1729, %v1761
    %vm1763 = vcmp.eq.f32.partialorder %v1729, inf
    %v1764 = vsel %vm1763, %v1729, %v1762
    %vm1765 = vcmp.eq.f32.partialorder %v1729, 0.0
    %v1766 = vand.u32 %v1729, 2147483648
    %v1767 = vsel %vm1765, %v1766, %v1764
    %v1768 = vrsqrt.pop %v1730
    %v1769 = vmul.f32 %v1768, %v1730
    %v1770 = vmul.f32 %v1769, %v1768
    %v1771 = vmul.f32 0.5, %v1770
    %v1772 = vsub.f32 1.5, %v1771
    %v1773 = vmul.f32 %v1768, %v1772
    %v1774 = vmul.f32 %v1730, %v1773
    %vm1775 = vcmp.eq.f32.partialorder %v1730, inf
    %v1776 = vsel %vm1775, %v1730, %v1774
    %vm1777 = vcmp.eq.f32.partialorder %v1730, 0.0
    %v1778 = vand.u32 %v1730, 2147483648
    %v1779 = vsel %vm1777, %v1778, %v1776
    %v1780 = vrsqrt.pop %v1731
    %v1781 = vmul.f32 %v1780, %v1731
    %v1782 = vmul.f32 %v1781, %v1780
    %v1783 = vmul.f32 0.5, %v1782
    %v1784 = vsub.f32 1.5, %v1783
    %v1785 = vmul.f32 %v1780, %v1784
    %v1786 = vmul.f32 %v1731, %v1785
    %vm1787 = vcmp.eq.f32.partialorder %v1731, inf
    %v1788 = vsel %vm1787, %v1731, %v1786
    %vm1789 = vcmp.eq.f32.partialorder %v1731, 0.0
    %v1790 = vand.u32 %v1731, 2147483648
    %v1791 = vsel %vm1789, %v1790, %v1788
    %v1792 = vrsqrt.pop %v1732
    %v1793 = vmul.f32 %v1792, %v1732
    %v1794 = vmul.f32 %v1793, %v1792
    %v1795 = vmul.f32 0.5, %v1794
    %v1796 = vsub.f32 1.5, %v1795
    %v1797 = vmul.f32 %v1792, %v1796
    %v1798 = vmul.f32 %v1732, %v1797
    %vm1799 = vcmp.eq.f32.partialorder %v1732, inf
    %v1800 = vsel %vm1799, %v1732, %v1798
    %vm1801 = vcmp.eq.f32.partialorder %v1732, 0.0
    %v1802 = vand.u32 %v1732, 2147483648
    %v1803 = vsel %vm1801, %v1802, %v1800
    %v1804 = vrsqrt.pop %v1733
    %v1805 = vmul.f32 %v1804, %v1733
    %v1806 = vmul.f32 %v1805, %v1804
    %v1807 = vmul.f32 0.5, %v1806
    %v1808 = vsub.f32 1.5, %v1807
    %v1809 = vmul.f32 %v1804, %v1808
    %v1810 = vmul.f32 %v1733, %v1809
    %vm1811 = vcmp.eq.f32.partialorder %v1733, inf
    %v1812 = vsel %vm1811, %v1733, %v1810
    %vm1813 = vcmp.eq.f32.partialorder %v1733, 0.0
    %v1814 = vand.u32 %v1733, 2147483648
    %v1815 = vsel %vm1813, %v1814, %v1812
    %v1816 = vrsqrt.pop %v1734
    %v1817 = vmul.f32 %v1816, %v1734
    %v1818 = vmul.f32 %v1817, %v1816
    %v1819 = vmul.f32 0.5, %v1818
    %v1820 = vsub.f32 1.5, %v1819
    %v1821 = vmul.f32 %v1816, %v1820
    %v1822 = vmul.f32 %v1734, %v1821
    %vm1823 = vcmp.eq.f32.partialorder %v1734, inf
    %v1824 = vsel %vm1823, %v1734, %v1822
    %vm1825 = vcmp.eq.f32.partialorder %v1734, 0.0
    %v1826 = vand.u32 %v1734, 2147483648
    %v1827 = vsel %vm1825, %v1826, %v1824
    %v1828 = vrsqrt.pop %v1735
    %v1829 = vmul.f32 %v1828, %v1735
    %v1830 = vmul.f32 %v1829, %v1828
    %v1831 = vmul.f32 0.5, %v1830
    %v1832 = vsub.f32 1.5, %v1831
    %v1833 = vmul.f32 %v1828, %v1832
    %v1834 = vmul.f32 %v1735, %v1833
    %vm1835 = vcmp.eq.f32.partialorder %v1735, inf
    %v1836 = vsel %vm1835, %v1735, %v1834
    %vm1837 = vcmp.eq.f32.partialorder %v1735, 0.0
    %v1838 = vand.u32 %v1735, 2147483648
    %v1839 = vsel %vm1837, %v1838, %v1836
    %v1840 = vrsqrt.pop %v1736
    %v1841 = vmul.f32 %v1840, %v1736
    %v1842 = vmul.f32 %v1841, %v1840
    %v1843 = vmul.f32 0.5, %v1842
    %v1844 = vsub.f32 1.5, %v1843
    %v1845 = vmul.f32 %v1840, %v1844
    %v1846 = vmul.f32 %v1736, %v1845
    %vm1847 = vcmp.eq.f32.partialorder %v1736, inf
    %v1848 = vsel %vm1847, %v1736, %v1846
    %vm1849 = vcmp.eq.f32.partialorder %v1736, 0.0
    %v1850 = vand.u32 %v1736, 2147483648
    %v1851 = vsel %vm1849, %v1850, %v1848
    %v1852 = vrsqrt.pop %v1737
    %v1853 = vmul.f32 %v1852, %v1737
    %v1854 = vmul.f32 %v1853, %v1852
    %v1855 = vmul.f32 0.5, %v1854
    %v1856 = vsub.f32 1.5, %v1855
    %v1857 = vmul.f32 %v1852, %v1856
    %v1858 = vmul.f32 %v1737, %v1857
    %vm1859 = vcmp.eq.f32.partialorder %v1737, inf
    %v1860 = vsel %vm1859, %v1737, %v1858
    %vm1861 = vcmp.eq.f32.partialorder %v1737, 0.0
    %v1862 = vand.u32 %v1737, 2147483648
    %v1863 = vsel %vm1861, %v1862, %v1860
    %v1864 = vrsqrt.pop %v1738
    %v1865 = vmul.f32 %v1864, %v1738
    %v1866 = vmul.f32 %v1865, %v1864
    %v1867 = vmul.f32 0.5, %v1866
    %v1868 = vsub.f32 1.5, %v1867
    %v1869 = vmul.f32 %v1864, %v1868
    %v1870 = vmul.f32 %v1738, %v1869
    %vm1871 = vcmp.eq.f32.partialorder %v1738, inf
    %v1872 = vsel %vm1871, %v1738, %v1870
    %vm1873 = vcmp.eq.f32.partialorder %v1738, 0.0
    %v1874 = vand.u32 %v1738, 2147483648
    %v1875 = vsel %vm1873, %v1874, %v1872
    %v1876 = vrsqrt.pop %v1739
    %v1877 = vmul.f32 %v1876, %v1739
    %v1878 = vmul.f32 %v1877, %v1876
    %v1879 = vmul.f32 0.5, %v1878
    %v1880 = vsub.f32 1.5, %v1879
    %v1881 = vmul.f32 %v1876, %v1880
    %v1882 = vmul.f32 %v1739, %v1881
    %vm1883 = vcmp.eq.f32.partialorder %v1739, inf
    %v1884 = vsel %vm1883, %v1739, %v1882
    %vm1885 = vcmp.eq.f32.partialorder %v1739, 0.0
    %v1886 = vand.u32 %v1739, 2147483648
    %v1887 = vsel %vm1885, %v1886, %v1884
    %v1888 = vrsqrt.pop %v1740
    %v1889 = vmul.f32 %v1888, %v1740
    %v1890 = vmul.f32 %v1889, %v1888
    %v1891 = vmul.f32 0.5, %v1890
    %v1892 = vsub.f32 1.5, %v1891
    %v1893 = vmul.f32 %v1888, %v1892
    %v1894 = vmul.f32 %v1740, %v1893
    %vm1895 = vcmp.eq.f32.partialorder %v1740, inf
    %v1896 = vsel %vm1895, %v1740, %v1894
    %vm1897 = vcmp.eq.f32.partialorder %v1740, 0.0
    %v1898 = vand.u32 %v1740, 2147483648
    %v1899 = vsel %vm1897, %v1898, %v1896
    %v1900 = vrsqrt.pop %v1741
    %v1901 = vmul.f32 %v1900, %v1741
    %v1902 = vmul.f32 %v1901, %v1900
    %v1903 = vmul.f32 0.5, %v1902
    %v1904 = vsub.f32 1.5, %v1903
    %v1905 = vmul.f32 %v1900, %v1904
    %v1906 = vmul.f32 %v1741, %v1905
    %vm1907 = vcmp.eq.f32.partialorder %v1741, inf
    %v1908 = vsel %vm1907, %v1741, %v1906
    %vm1909 = vcmp.eq.f32.partialorder %v1741, 0.0
    %v1910 = vand.u32 %v1741, 2147483648
    %v1911 = vsel %vm1909, %v1910, %v1908
    %v1912 = vrsqrt.pop %v1742
    %v1913 = vmul.f32 %v1912, %v1742
    %v1914 = vmul.f32 %v1913, %v1912
    %v1915 = vmul.f32 0.5, %v1914
    %v1916 = vsub.f32 1.5, %v1915
    %v1917 = vmul.f32 %v1912, %v1916
    %v1918 = vmul.f32 %v1742, %v1917
    %vm1919 = vcmp.eq.f32.partialorder %v1742, inf
    %v1920 = vsel %vm1919, %v1742, %v1918
    %vm1921 = vcmp.eq.f32.partialorder %v1742, 0.0
    %v1922 = vand.u32 %v1742, 2147483648
    %v1923 = vsel %vm1921, %v1922, %v1920
    %v1924 = vrsqrt.pop %v1743
    %v1925 = vmul.f32 %v1924, %v1743
    %v1926 = vmul.f32 %v1925, %v1924
    %v1927 = vmul.f32 0.5, %v1926
    %v1928 = vsub.f32 1.5, %v1927
    %v1929 = vmul.f32 %v1924, %v1928
    %v1930 = vmul.f32 %v1743, %v1929
    %vm1931 = vcmp.eq.f32.partialorder %v1743, inf
    %v1932 = vsel %vm1931, %v1743, %v1930
    %vm1933 = vcmp.eq.f32.partialorder %v1743, 0.0
    %v1934 = vand.u32 %v1743, 2147483648
    %v1935 = vsel %vm1933, %v1934, %v1932
    %v1936 = vmax.f32 %v1755, 1e-12
    %v1937 = vmax.f32 %v1767, 1e-12
    %v1938 = vmax.f32 %v1779, 1e-12
    %v1939 = vmax.f32 %v1791, 1e-12
    %v1940 = vmax.f32 %v1803, 1e-12
    %v1941 = vmax.f32 %v1815, 1e-12
    %v1942 = vmax.f32 %v1827, 1e-12
    %v1943 = vmax.f32 %v1839, 1e-12
    %v1944 = vmax.f32 %v1851, 1e-12
    %v1945 = vmax.f32 %v1863, 1e-12
    %v1946 = vmax.f32 %v1875, 1e-12
    %v1947 = vmax.f32 %v1887, 1e-12
    %v1948 = vmax.f32 %v1899, 1e-12
    %v1949 = vmax.f32 %v1911, 1e-12
    %v1950 = vmax.f32 %v1923, 1e-12
    %v1951 = vmax.f32 %v1935, 1e-12
    %v1952 = vperm.slane %v1936, 2
    %v1953 = vperm.slane %v1937, 2
    %v1954 = vperm.slane %v1938, 2
    %v1955 = vperm.slane %v1939, 2
    %v1956 = vperm.slane %v1940, 2
    %v1957 = vperm.slane %v1941, 2
    %v1958 = vperm.slane %v1942, 2
    %v1959 = vperm.slane %v1943, 2
    %v1960 = vperm.slane %v1944, 2
    %v1961 = vperm.slane %v1945, 2
    %v1962 = vperm.slane %v1946, 2
    %v1963 = vperm.slane %v1947, 2
    %v1964 = vperm.slane %v1948, 2
    %v1965 = vperm.slane %v1949, 2
    %v1966 = vperm.slane %v1950, 2
    %v1967 = vperm.slane %v1951, 2
    %v1968 = vrcp.pop %v1952
    %v1969 = vmul.f32 %v1952, %v1968
    %v1970 = vsub.f32 1.0, %v1969
    %v1971 = vmul.f32 %v1968, %v1970
    %v1972 = vadd.f32 %v1968, %v1971
    %vm1973 = vweird.f32 %v1952
    %vm1974 = vweird.f32 %v1968
    %vm1975 = vmor %vm1973, %vm1974
    %v1976 = vsel %vm1975, %v1968, %v1972
    %v1977 = vand.u32 2147483647, %v1952
    %vm1978 = vcmp.eq.f32.partialorder %v1977, 8.507059e+37
    %v1979 = vand.u32 %v1952, 2147483648
    %v1980 = vor.u32 1.1754944e-38, %v1979
    %v1981 = vsel %vm1978, %v1980, %v1976
    %v1982 = vmul.f32 %v339, %v1981
    %v1983 = vrcp.pop %v1953
    %v1984 = vmul.f32 %v1953, %v1983
    %v1985 = vsub.f32 1.0, %v1984
    %v1986 = vmul.f32 %v1983, %v1985
    %v1987 = vadd.f32 %v1983, %v1986
    %vm1988 = vweird.f32 %v1953
    %vm1989 = vweird.f32 %v1983
    %vm1990 = vmor %vm1988, %vm1989
    %v1991 = vsel %vm1990, %v1983, %v1987
    %v1992 = vand.u32 2147483647, %v1953
    %vm1993 = vcmp.eq.f32.partialorder %v1992, 8.507059e+37
    %v1994 = vand.u32 %v1953, 2147483648
    %v1995 = vor.u32 1.1754944e-38, %v1994
    %v1996 = vsel %vm1993, %v1995, %v1991
    %v1997 = vmul.f32 %v362, %v1996
    %v1998 = vrcp.pop %v1954
    %v1999 = vmul.f32 %v1954, %v1998
    %v2000 = vsub.f32 1.0, %v1999
    %v2001 = vmul.f32 %v1998, %v2000
    %v2002 = vadd.f32 %v1998, %v2001
    %vm2003 = vweird.f32 %v1954
    %vm2004 = vweird.f32 %v1998
    %vm2005 = vmor %vm2003, %vm2004
    %v2006 = vsel %vm2005, %v1998, %v2002
    %v2007 = vand.u32 2147483647, %v1954
    %vm2008 = vcmp.eq.f32.partialorder %v2007, 8.507059e+37
    %v2009 = vand.u32 %v1954, 2147483648
    %v2010 = vor.u32 1.1754944e-38, %v2009
    %v2011 = vsel %vm2008, %v2010, %v2006
    %v2012 = vmul.f32 %v385, %v2011
    %v2013 = vrcp.pop %v1955
    %v2014 = vmul.f32 %v1955, %v2013
    %v2015 = vsub.f32 1.0, %v2014
    %v2016 = vmul.f32 %v2013, %v2015
    %v2017 = vadd.f32 %v2013, %v2016
    %vm2018 = vweird.f32 %v1955
    %vm2019 = vweird.f32 %v2013
    %vm2020 = vmor %vm2018, %vm2019
    %v2021 = vsel %vm2020, %v2013, %v2017
    %v2022 = vand.u32 2147483647, %v1955
    %vm2023 = vcmp.eq.f32.partialorder %v2022, 8.507059e+37
    %v2024 = vand.u32 %v1955, 2147483648
    %v2025 = vor.u32 1.1754944e-38, %v2024
    %v2026 = vsel %vm2023, %v2025, %v2021
    %v2027 = vmul.f32 %v408, %v2026
    %v2028 = vrcp.pop %v1956
    %v2029 = vmul.f32 %v1956, %v2028
    %v2030 = vsub.f32 1.0, %v2029
    %v2031 = vmul.f32 %v2028, %v2030
    %v2032 = vadd.f32 %v2028, %v2031
    %vm2033 = vweird.f32 %v1956
    %vm2034 = vweird.f32 %v2028
    %vm2035 = vmor %vm2033, %vm2034
    %v2036 = vsel %vm2035, %v2028, %v2032
    %v2037 = vand.u32 2147483647, %v1956
    %vm2038 = vcmp.eq.f32.partialorder %v2037, 8.507059e+37
    %v2039 = vand.u32 %v1956, 2147483648
    %v2040 = vor.u32 1.1754944e-38, %v2039
    %v2041 = vsel %vm2038, %v2040, %v2036
    %v2042 = vmul.f32 %v431, %v2041
    %v2043 = vrcp.pop %v1957
    %v2044 = vmul.f32 %v1957, %v2043
    %v2045 = vsub.f32 1.0, %v2044
    %v2046 = vmul.f32 %v2043, %v2045
    %v2047 = vadd.f32 %v2043, %v2046
    %vm2048 = vweird.f32 %v1957
    %vm2049 = vweird.f32 %v2043
    %vm2050 = vmor %vm2048, %vm2049
    %v2051 = vsel %vm2050, %v2043, %v2047
    %v2052 = vand.u32 2147483647, %v1957
    %vm2053 = vcmp.eq.f32.partialorder %v2052, 8.507059e+37
    %v2054 = vand.u32 %v1957, 2147483648
    %v2055 = vor.u32 1.1754944e-38, %v2054
    %v2056 = vsel %vm2053, %v2055, %v2051
    %v2057 = vmul.f32 %v454, %v2056
    %v2058 = vrcp.pop %v1958
    %v2059 = vmul.f32 %v1958, %v2058
    %v2060 = vsub.f32 1.0, %v2059
    %v2061 = vmul.f32 %v2058, %v2060
    %v2062 = vadd.f32 %v2058, %v2061
    %vm2063 = vweird.f32 %v1958
    %vm2064 = vweird.f32 %v2058
    %vm2065 = vmor %vm2063, %vm2064
    %v2066 = vsel %vm2065, %v2058, %v2062
    %v2067 = vand.u32 2147483647, %v1958
    %vm2068 = vcmp.eq.f32.partialorder %v2067, 8.507059e+37
    %v2069 = vand.u32 %v1958, 2147483648
    %v2070 = vor.u32 1.1754944e-38, %v2069
    %v2071 = vsel %vm2068, %v2070, %v2066
    %v2072 = vmul.f32 %v477, %v2071
    %v2073 = vrcp.pop %v1959
    %v2074 = vmul.f32 %v1959, %v2073
    %v2075 = vsub.f32 1.0, %v2074
    %v2076 = vmul.f32 %v2073, %v2075
    %v2077 = vadd.f32 %v2073, %v2076
    %vm2078 = vweird.f32 %v1959
    %vm2079 = vweird.f32 %v2073
    %vm2080 = vmor %vm2078, %vm2079
    %v2081 = vsel %vm2080, %v2073, %v2077
    %v2082 = vand.u32 2147483647, %v1959
    %vm2083 = vcmp.eq.f32.partialorder %v2082, 8.507059e+37
    %v2084 = vand.u32 %v1959, 2147483648
    %v2085 = vor.u32 1.1754944e-38, %v2084
    %v2086 = vsel %vm2083, %v2085, %v2081
    %v2087 = vmul.f32 %v500, %v2086
    %v2088 = vrcp.pop %v1960
    %v2089 = vmul.f32 %v1960, %v2088
    %v2090 = vsub.f32 1.0, %v2089
    %v2091 = vmul.f32 %v2088, %v2090
    %v2092 = vadd.f32 %v2088, %v2091
    %vm2093 = vweird.f32 %v1960
    %vm2094 = vweird.f32 %v2088
    %vm2095 = vmor %vm2093, %vm2094
    %v2096 = vsel %vm2095, %v2088, %v2092
    %v2097 = vand.u32 2147483647, %v1960
    %vm2098 = vcmp.eq.f32.partialorder %v2097, 8.507059e+37
    %v2099 = vand.u32 %v1960, 2147483648
    %v2100 = vor.u32 1.1754944e-38, %v2099
    %v2101 = vsel %vm2098, %v2100, %v2096
    %v2102 = vmul.f32 %v523, %v2101
    %v2103 = vrcp.pop %v1961
    %v2104 = vmul.f32 %v1961, %v2103
    %v2105 = vsub.f32 1.0, %v2104
    %v2106 = vmul.f32 %v2103, %v2105
    %v2107 = vadd.f32 %v2103, %v2106
    %vm2108 = vweird.f32 %v1961
    %vm2109 = vweird.f32 %v2103
    %vm2110 = vmor %vm2108, %vm2109
    %v2111 = vsel %vm2110, %v2103, %v2107
    %v2112 = vand.u32 2147483647, %v1961
    %vm2113 = vcmp.eq.f32.partialorder %v2112, 8.507059e+37
    %v2114 = vand.u32 %v1961, 2147483648
    %v2115 = vor.u32 1.1754944e-38, %v2114
    %v2116 = vsel %vm2113, %v2115, %v2111
    %v2117 = vmul.f32 %v546, %v2116
    %v2118 = vrcp.pop %v1962
    %v2119 = vmul.f32 %v1962, %v2118
    %v2120 = vsub.f32 1.0, %v2119
    %v2121 = vmul.f32 %v2118, %v2120
    %v2122 = vadd.f32 %v2118, %v2121
    %vm2123 = vweird.f32 %v1962
    %vm2124 = vweird.f32 %v2118
    %vm2125 = vmor %vm2123, %vm2124
    %v2126 = vsel %vm2125, %v2118, %v2122
    %v2127 = vand.u32 2147483647, %v1962
    %vm2128 = vcmp.eq.f32.partialorder %v2127, 8.507059e+37
    %v2129 = vand.u32 %v1962, 2147483648
    %v2130 = vor.u32 1.1754944e-38, %v2129
    %v2131 = vsel %vm2128, %v2130, %v2126
    %v2132 = vmul.f32 %v569, %v2131
    %v2133 = vrcp.pop %v1963
    %v2134 = vmul.f32 %v1963, %v2133
    %v2135 = vsub.f32 1.0, %v2134
    %v2136 = vmul.f32 %v2133, %v2135
    %v2137 = vadd.f32 %v2133, %v2136
    %vm2138 = vweird.f32 %v1963
    %vm2139 = vweird.f32 %v2133
    %vm2140 = vmor %vm2138, %vm2139
    %v2141 = vsel %vm2140, %v2133, %v2137
    %v2142 = vand.u32 2147483647, %v1963
    %vm2143 = vcmp.eq.f32.partialorder %v2142, 8.507059e+37
    %v2144 = vand.u32 %v1963, 2147483648
    %v2145 = vor.u32 1.1754944e-38, %v2144
    %v2146 = vsel %vm2143, %v2145, %v2141
    %v2147 = vmul.f32 %v592, %v2146
    %v2148 = vrcp.pop %v1964
    %v2149 = vmul.f32 %v1964, %v2148
    %v2150 = vsub.f32 1.0, %v2149
    %v2151 = vmul.f32 %v2148, %v2150
    %v2152 = vadd.f32 %v2148, %v2151
    %vm2153 = vweird.f32 %v1964
    %vm2154 = vweird.f32 %v2148
    %vm2155 = vmor %vm2153, %vm2154
    %v2156 = vsel %vm2155, %v2148, %v2152
    %v2157 = vand.u32 2147483647, %v1964
    %vm2158 = vcmp.eq.f32.partialorder %v2157, 8.507059e+37
    %v2159 = vand.u32 %v1964, 2147483648
    %v2160 = vor.u32 1.1754944e-38, %v2159
    %v2161 = vsel %vm2158, %v2160, %v2156
    %v2162 = vmul.f32 %v615, %v2161
    %v2163 = vrcp.pop %v1965
    %v2164 = vmul.f32 %v1965, %v2163
    %v2165 = vsub.f32 1.0, %v2164
    %v2166 = vmul.f32 %v2163, %v2165
    %v2167 = vadd.f32 %v2163, %v2166
    %vm2168 = vweird.f32 %v1965
    %vm2169 = vweird.f32 %v2163
    %vm2170 = vmor %vm2168, %vm2169
    %v2171 = vsel %vm2170, %v2163, %v2167
    %v2172 = vand.u32 2147483647, %v1965
    %vm2173 = vcmp.eq.f32.partialorder %v2172, 8.507059e+37
    %v2174 = vand.u32 %v1965, 2147483648
    %v2175 = vor.u32 1.1754944e-38, %v2174
    %v2176 = vsel %vm2173, %v2175, %v2171
    %v2177 = vmul.f32 %v638, %v2176
    %v2178 = vrcp.pop %v1966
    %v2179 = vmul.f32 %v1966, %v2178
    %v2180 = vsub.f32 1.0, %v2179
    %v2181 = vmul.f32 %v2178, %v2180
    %v2182 = vadd.f32 %v2178, %v2181
    %vm2183 = vweird.f32 %v1966
    %vm2184 = vweird.f32 %v2178
    %vm2185 = vmor %vm2183, %vm2184
    %v2186 = vsel %vm2185, %v2178, %v2182
    %v2187 = vand.u32 2147483647, %v1966
    %vm2188 = vcmp.eq.f32.partialorder %v2187, 8.507059e+37
    %v2189 = vand.u32 %v1966, 2147483648
    %v2190 = vor.u32 1.1754944e-38, %v2189
    %v2191 = vsel %vm2188, %v2190, %v2186
    %v2192 = vmul.f32 %v661, %v2191
    %v2193 = vrcp.pop %v1967
    %v2194 = vmul.f32 %v1967, %v2193
    %v2195 = vsub.f32 1.0, %v2194
    %v2196 = vmul.f32 %v2193, %v2195
    %v2197 = vadd.f32 %v2193, %v2196
    %vm2198 = vweird.f32 %v1967
    %vm2199 = vweird.f32 %v2193
    %vm2200 = vmor %vm2198, %vm2199
    %v2201 = vsel %vm2200, %v2193, %v2197
    %v2202 = vand.u32 2147483647, %v1967
    %vm2203 = vcmp.eq.f32.partialorder %v2202, 8.507059e+37
    %v2204 = vand.u32 %v1967, 2147483648
    %v2205 = vor.u32 1.1754944e-38, %v2204
    %v2206 = vsel %vm2203, %v2205, %v2201
    %v2207 = vmul.f32 %v684, %v2206
    %2216 = vst [vmem:[#allocation1] ss:$2 sm:$0xff] %v1560
    %s2217 = scalar_lea.vmem [#allocation1], 16
    %2218 = vst [vmem:[%s2217] ss:$2 sm:$0xff] %v1561
    %s2219 = scalar_lea.vmem [#allocation1], 32
    %2220 = vst [vmem:[%s2219] ss:$2 sm:$0xff] %v1562
    %s2221 = scalar_lea.vmem [#allocation1], 48
    %2222 = vst [vmem:[%s2221] ss:$2 sm:$0xff] %v1563
    %v2223 = vld.sshfl [vmem:[#allocation1] sm:$0xff pattern:$0x75316420]
    %v2224 = vld.sshfl [vmem:[#allocation1 + $0x8] sm:$0xff pattern:$0x75316420]
    %v2225 = vld.sshfl [vmem:[#allocation1 + $0x10] sm:$0xff pattern:$0x75316420]
    %v2226 = vld.sshfl [vmem:[#allocation1 + $0x18] sm:$0xff pattern:$0x75316420]
    %v2227 = vld.sshfl [vmem:[#allocation1 + $0x20] sm:$0xff pattern:$0x75316420]
    %v2228 = vld.sshfl [vmem:[#allocation1 + $0x28] sm:$0xff pattern:$0x75316420]
    %v2229 = vld.sshfl [vmem:[#allocation1 + $0x30] sm:$0xff pattern:$0x75316420]
    %v2230 = vld.sshfl [vmem:[#allocation1 + $0x38] sm:$0xff pattern:$0x75316420]
    %2231 = vst [vmem:[#allocation1] ss:$2 sm:$0xff] %v1564
    %2232 = vst [vmem:[%s2217] ss:$2 sm:$0xff] %v1565
    %2233 = vst [vmem:[%s2219] ss:$2 sm:$0xff] %v1566
    %2234 = vst [vmem:[%s2221] ss:$2 sm:$0xff] %v1567
    %v2235 = vld.sshfl [vmem:[#allocation1] sm:$0xff pattern:$0x75316420]
    %v2236 = vld.sshfl [vmem:[#allocation1 + $0x8] sm:$0xff pattern:$0x75316420]
    %v2237 = vld.sshfl [vmem:[#allocation1 + $0x10] sm:$0xff pattern:$0x75316420]
    %v2238 = vld.sshfl [vmem:[#allocation1 + $0x18] sm:$0xff pattern:$0x75316420]
    %v2239 = vld.sshfl [vmem:[#allocation1 + $0x20] sm:$0xff pattern:$0x75316420]
    %v2240 = vld.sshfl [vmem:[#allocation1 + $0x28] sm:$0xff pattern:$0x75316420]
    %v2241 = vld.sshfl [vmem:[#allocation1 + $0x30] sm:$0xff pattern:$0x75316420]
    %v2242 = vld.sshfl [vmem:[#allocation1 + $0x38] sm:$0xff pattern:$0x75316420]
    %v2243 = vrot.slane %v2223, 2
    %v2244 = vrot.slane %v2224, 2
    %v2245 = vrot.slane %v2225, 2
    %v2246 = vrot.slane %v2226, 2
    %v2247 = vrot.slane %v2227, 2
    %v2248 = vrot.slane %v2228, 2
    %v2249 = vrot.slane %v2229, 2
    %v2250 = vrot.slane %v2230, 2
    %v2251 = vrot.slane %v2235, 2
    %v2252 = vrot.slane %v2236, 2
    %v2253 = vrot.slane %v2237, 2
    %v2254 = vrot.slane %v2238, 2
    %v2255 = vrot.slane %v2239, 2
    %v2256 = vrot.slane %v2240, 2
    %v2257 = vrot.slane %v2241, 2
    %v2258 = vrot.slane %v2242, 2
    %vm2275 = vcmask 1042432
    %v2276 = vsel %vm2275, %v828, %v1342
    %v2277 = vsel %vm2275, %v843, %v1343
    %v2278 = vsel %vm2275, %v858, %v1344
    %v2279 = vsel %vm2275, %v873, %v1345
    %v2280 = vsel %vm2275, %v888, %v1346
    %v2281 = vsel %vm2275, %v903, %v1347
    %v2282 = vsel %vm2275, %v918, %v1348
    %v2283 = vsel %vm2275, %v933, %v1349
    %v2284 = vsel %vm2275, %v948, %v1350
    %v2285 = vsel %vm2275, %v963, %v1351
    %v2286 = vsel %vm2275, %v978, %v1352
    %v2287 = vsel %vm2275, %v993, %v1353
    %v2288 = vsel %vm2275, %v1008, %v1354
    %v2289 = vsel %vm2275, %v1023, %v1355
    %v2290 = vsel %vm2275, %v1038, %v1356
    %v2291 = vsel %vm2275, %v1053, %v1357
    %vm2292 = vcmask 1045504
    %v2293 = vsel %vm2292, %v2276, %v2243
    %v2294 = vsel %vm2292, %v2277, %v2244
    %v2295 = vsel %vm2292, %v2278, %v2245
    %v2296 = vsel %vm2292, %v2279, %v2246
    %v2297 = vsel %vm2292, %v2280, %v2247
    %v2298 = vsel %vm2292, %v2281, %v2248
    %v2299 = vsel %vm2292, %v2282, %v2249
    %v2300 = vsel %vm2292, %v2283, %v2250
    %v2301 = vsel %vm2292, %v2284, %v2251
    %v2302 = vsel %vm2292, %v2285, %v2252
    %v2303 = vsel %vm2292, %v2286, %v2253
    %v2304 = vsel %vm2292, %v2287, %v2254
    %v2305 = vsel %vm2292, %v2288, %v2255
    %v2306 = vsel %vm2292, %v2289, %v2256
    %v2307 = vsel %vm2292, %v2290, %v2257
    %v2308 = vsel %vm2292, %v2291, %v2258
    %vm2309 = vcmask 1040384
    %v2310 = vsel %vm2309, %v2243, %v1068
    %v2311 = vsel %vm2309, %v2244, %v1083
    %v2312 = vsel %vm2309, %v2245, %v1098
    %v2313 = vsel %vm2309, %v2246, %v1113
    %v2314 = vsel %vm2309, %v2247, %v1128
    %v2315 = vsel %vm2309, %v2248, %v1143
    %v2316 = vsel %vm2309, %v2249, %v1158
    %v2317 = vsel %vm2309, %v2250, %v1173
    %v2318 = vsel %vm2309, %v2251, %v1188
    %v2319 = vsel %vm2309, %v2252, %v1203
    %v2320 = vsel %vm2309, %v2253, %v1218
    %v2321 = vsel %vm2309, %v2254, %v1233
    %v2322 = vsel %vm2309, %v2255, %v1248
    %v2323 = vsel %vm2309, %v2256, %v1263
    %v2324 = vsel %vm2309, %v2257, %v1278
    %v2325 = vsel %vm2309, %v2258, %v1293
    %v2326 = vsel %vm1517, %v2310, %v1982
    %v2327 = vsel %vm1517, %v2311, %v1997
    %v2328 = vsel %vm1517, %v2312, %v2012
    %v2329 = vsel %vm1517, %v2313, %v2027
    %v2330 = vsel %vm1517, %v2314, %v2042
    %v2331 = vsel %vm1517, %v2315, %v2057
    %v2332 = vsel %vm1517, %v2316, %v2072
    %v2333 = vsel %vm1517, %v2317, %v2087
    %v2334 = vsel %vm1517, %v2318, %v2102
    %v2335 = vsel %vm1517, %v2319, %v2117
    %v2336 = vsel %vm1517, %v2320, %v2132
    %v2337 = vsel %vm1517, %v2321, %v2147
    %v2338 = vsel %vm1517, %v2322, %v2162
    %v2339 = vsel %vm1517, %v2323, %v2177
    %v2340 = vsel %vm1517, %v2324, %v2192
    %v2341 = vsel %vm1517, %v2325, %v2207
    %v2342 = vsel %vm2292, %v2326, %v1390
    %v2343 = vsel %vm2292, %v2327, %v1391
    %v2344 = vsel %vm2292, %v2328, %v1392
    %v2345 = vsel %vm2292, %v2329, %v1393
    %v2346 = vsel %vm2292, %v2330, %v1394
    %v2347 = vsel %vm2292, %v2331, %v1395
    %v2348 = vsel %vm2292, %v2332, %v1396
    %v2349 = vsel %vm2292, %v2333, %v1397
    %v2350 = vsel %vm2292, %v2334, %v1398
    %v2351 = vsel %vm2292, %v2335, %v1399
    %v2352 = vsel %vm2292, %v2336, %v1400
    %v2353 = vsel %vm2292, %v2337, %v1401
    %v2354 = vsel %vm2292, %v2338, %v1402
    %v2355 = vsel %vm2292, %v2339, %v1403
    %v2356 = vsel %vm2292, %v2340, %v1404
    %v2357 = vsel %vm2292, %v2341, %v1405
    %2358 = vst [vmem:[#allocation7] sm:$0xff] %v2293
    %2359 = vst [vmem:[#allocation7 + $0x8] sm:$0xff] %v2294
    %2360 = vst [vmem:[#allocation7 + $0x10] sm:$0xff] %v2295
    %2361 = vst [vmem:[#allocation7 + $0x18] sm:$0xff] %v2296
    %2362 = vst [vmem:[#allocation7 + $0x20] sm:$0xff] %v2297
    %2363 = vst [vmem:[#allocation7 + $0x28] sm:$0xff] %v2298
    %2364 = vst [vmem:[#allocation7 + $0x30] sm:$0xff] %v2299
    %2365 = vst [vmem:[#allocation7 + $0x38] sm:$0xff] %v2300
    %2366 = vst [vmem:[#allocation7 + $0x40] sm:$0xff] %v2301
    %2367 = vst [vmem:[#allocation7 + $0x48] sm:$0xff] %v2302
    %2368 = vst [vmem:[#allocation7 + $0x50] sm:$0xff] %v2303
    %2369 = vst [vmem:[#allocation7 + $0x58] sm:$0xff] %v2304
    %2370 = vst [vmem:[#allocation7 + $0x60] sm:$0xff] %v2305
    %2371 = vst [vmem:[#allocation7 + $0x68] sm:$0xff] %v2306
    %2372 = vst [vmem:[#allocation7 + $0x70] sm:$0xff] %v2307
    %2373 = vst [vmem:[#allocation7 + $0x78] sm:$0xff] %v2308
    %2374 = vst [vmem:[#allocation7 + $0x80] sm:$0xff] %v2342
    %2375 = vst [vmem:[#allocation7 + $0x88] sm:$0xff] %v2343
    %2376 = vst [vmem:[#allocation7 + $0x90] sm:$0xff] %v2344
    %2377 = vst [vmem:[#allocation7 + $0x98] sm:$0xff] %v2345
    %2378 = vst [vmem:[#allocation7 + $0xa0] sm:$0xff] %v2346
    %2379 = vst [vmem:[#allocation7 + $0xa8] sm:$0xff] %v2347
    %2380 = vst [vmem:[#allocation7 + $0xb0] sm:$0xff] %v2348
    %2381 = vst [vmem:[#allocation7 + $0xb8] sm:$0xff] %v2349
    %2382 = vst [vmem:[#allocation7 + $0xc0] sm:$0xff] %v2350
    %2383 = vst [vmem:[#allocation7 + $0xc8] sm:$0xff] %v2351
    %2384 = vst [vmem:[#allocation7 + $0xd0] sm:$0xff] %v2352
    %2385 = vst [vmem:[#allocation7 + $0xd8] sm:$0xff] %v2353
    %2386 = vst [vmem:[#allocation7 + $0xe0] sm:$0xff] %v2354
    %2387 = vst [vmem:[#allocation7 + $0xe8] sm:$0xff] %v2355
    %2388 = vst [vmem:[#allocation7 + $0xf0] sm:$0xff] %v2356
    %2389 = vst [vmem:[#allocation7 + $0xf8] sm:$0xff] %v2357
    %2390 = vst [vmem:[#allocation7 + $0x100] sm:$0x1] %v1406
    %2391 = vst [vmem:[#allocation7 + $0x108] sm:$0x1] %v1407
    %2392 = vst [vmem:[#allocation7 + $0x110] sm:$0x1] %v1408
    %2393 = vst [vmem:[#allocation7 + $0x118] sm:$0x1] %v1409
    %2394 = vst [vmem:[#allocation7 + $0x120] sm:$0x1] %v1410
    %2395 = vst [vmem:[#allocation7 + $0x128] sm:$0x1] %v1411
    %2396 = vst [vmem:[#allocation7 + $0x130] sm:$0x1] %v1412
    %2397 = vst [vmem:[#allocation7 + $0x138] sm:$0x1] %v1413
    %2398 = vst [vmem:[#allocation7 + $0x140] sm:$0x1] %v1414
    %2399 = vst [vmem:[#allocation7 + $0x148] sm:$0x1] %v1415
    %2400 = vst [vmem:[#allocation7 + $0x150] sm:$0x1] %v1416
    %2401 = vst [vmem:[#allocation7 + $0x158] sm:$0x1] %v1417
    %2402 = vst [vmem:[#allocation7 + $0x160] sm:$0x1] %v1418
    %2403 = vst [vmem:[#allocation7 + $0x168] sm:$0x1] %v1419
    %2404 = vst [vmem:[#allocation7 + $0x170] sm:$0x1] %v1420
    %2405 = vst [vmem:[#allocation7 + $0x178] sm:$0x1] %v1421
    // Predicated region
    $region26: #{tpu_custom_call.1} parent=1 // pred_check
      _
    $region27: #{tpu_custom_call.1} parent=1 // pred_check_branch
      %2407 = sbr.rel (0) target = $region29
    $region28: #{tpu_custom_call.1} parent=1 // pred_region
      %2409 = vsyncadd [#allocation4], 0
      %s2410 = sshll.u32 [#allocation7], 4
      %s2411 = int_to_ptr.vmem [resolvable:$true] %s2410
      %s2412 = sshll.u32 %s4, 4
      %s2413 = int_to_ptr.hbm [resolvable:$true] %s2412
      %2418 = dma.vmem_to_hbm [thread:$0]  %s2411, 6144, %s2413, [#allocation4], 2048, 2048, 128
    $region29: #{tpu_custom_call.1} parent=1 // pred_fallthru
      _
    // Predicated region
    $region30: #{tpu_custom_call.1} parent=1 // pred_check
      _
    $region31: #{tpu_custom_call.1} parent=1 // pred_check_branch
      %2420 = sbr.rel (0) target = $region33
    $region32: #{tpu_custom_call.1} parent=1 // pred_region
      %2422 = dma.done [#allocation4], 6144
    $region33: #{tpu_custom_call.1} parent=1 // pred_fallthru
      _
    %2423 = vsyncpa [#allocation3], 1
    %2424 = vsyncpa [#allocation6], 1
    %2425 = vsyncpa [#allocation4], 1

</llo_original>
